<compile_context>
chip_gen: v6e
topology: v6e:2x2x1
jax: 0.10.0
libtpu: 0.0.40
codegen_flags: <defaults>
</compile_context>

<pallas_src>
import numpy as np
import jax
import jax.numpy as jnp
from jax import lax
from jax.experimental import pallas as pl
from jax.experimental.pallas import tpu as pltpu


# ----------------------------------------------------------------------------- helpers
def _bilinear_matrix(out_size: int, in_size: int) -> np.ndarray:
    """Row-stochastic interpolation matrix M (out_size, in_size), align_corners=True."""
    M = np.zeros((out_size, in_size), dtype=np.float32)
    if out_size == 1 or in_size == 1:
        coords = np.zeros((out_size,), dtype=np.float64)
    else:
        coords = np.arange(out_size, dtype=np.float64) * (in_size - 1) / (out_size - 1)
    low = np.clip(np.floor(coords).astype(np.int64), 0, in_size - 1)
    high = np.clip(low + 1, 0, in_size - 1)
    frac = (coords - low).astype(np.float32)
    rows = np.arange(out_size)
    np.add.at(M, (rows, low), 1.0 - frac)
    np.add.at(M, (rows, high), frac)
    return M


def _pick_batch_block(n: int) -> int:
    """v7x has 2 TensorCores/chip -> keep a parallel batch grid; 1-TC chips fold the batch."""
    try:
        kind = jax.devices()[0].device_kind.lower()
    except Exception:
        kind = ""
    if n > 1 and "v7" in kind:
        return 1          # grid=(N,) "parallel" across the two cores
    return n              # single grid step, batch merged on the lane axis


# ----------------------------------------------------------------------------- kernel
def _make_kernel(NB, HW, OHW, Kp):
    def kernel(xcol_ref, w3_ref, w1_ref, b1_ref, kron_ref, out_ref):
        # xcol_ref: (1, 9*Cin+1, NB*HW) bf16  spatial (NB images) on lanes, ones row last
        # w3_ref  : (mid, 9*Cin+1)      bf16  BN scale folded into rows, BN shift last col
        # w1_ref  : (Kp, mid)           bf16  zero-padded to Kp rows
        # b1_ref  : (Kp, 1)             f32
        # kron_ref: (HW, OHW)           bf16  kron(Wh, Ww)^T
        # out_ref : (NB, Kp, OHW)       f32   lane-dense output block
        xcol = xcol_ref[0]                                                   # (9Cin+1, NB*HW)

        # 3x3 conv + BatchNorm (scale & shift folded) as one MXU matmul, then ReLU.
        y = jnp.dot(w3_ref[...], xcol, preferred_element_type=jnp.float32)   # (mid, NB*HW)
        y = jnp.maximum(y, 0.0).astype(jnp.bfloat16)

        # Dropout2d(p=0.1) is identity in eval mode.
        # 1x1 classification conv == channel matmul + bias.
        cls = jnp.dot(w1_ref[...], y, preferred_element_type=jnp.float32) + b1_ref[...]
        cls = cls.astype(jnp.bfloat16)                                       # (Kp, NB*HW)

        # Stack per-image class maps on sublanes so the bilinear upsample is a single
        # lane-dense matmul with NB*Kp LHS rows (better MXU RHS amortization).
        cls_s = jnp.concatenate([cls[:, n * HW:(n + 1) * HW] for n in range(NB)], axis=0)
        up = jnp.dot(cls_s, kron_ref[...], preferred_element_type=jnp.float32)  # (NB*Kp, OHW)
        out_ref[...] = up.reshape(NB, Kp, OHW)

    return kernel


# ----------------------------------------------------------------------------- wrapper
def decoder_psp_feature(x_nchw, params, out_h, out_w, batch_block=None):
    """x_nchw: (N, Cin, H, W) float32 -> (N, num_classes, out_h, out_w) float32."""
    w3, gamma, beta, mean, var, w1, b1 = (params[k] for k in
                                          ("w3", "gamma", "beta", "mean", "var", "w1", "b1"))
    N, Cin, H, W = x_nchw.shape
    mid = w3.shape[0]                 # 256 here (512 in the real module)
    K = w1.shape[0]                   # num_classes
    HW = H * W
    OHW = out_h * out_w
    Kp = ((K + 7) // 8) * 8           # pad classes to a full sublane tile (unmasked stores)

    NB = batch_block if batch_block is not None else _pick_batch_block(N)
    assert N % NB == 0
    G = N // NB                       # grid steps: 1 on v5e/v6e, N on v7x

    # --- glue: im2col with spatial on the last (lane) axis, NB images merged per block ----
    # TODO(synk): for the real Cin=4096 module, form the 9 shifted views in-kernel from the
    # padded image instead of materializing im2col in HBM (9x input bytes).
    xpad = jnp.pad(x_nchw, ((0, 0), (0, 0), (1, 1), (1, 1)))                    # (N,Cin,H+2,W+2)
    patches = [xpad[:, :, dy:dy + H, dx:dx + W] for dy in range(3) for dx in range(3)]
    xcol = jnp.stack(patches, axis=1).reshape(N, 9 * Cin, HW)                   # (N, 9Cin, H*W)
    xcol = xcol.reshape(G, NB, 9 * Cin, HW).transpose(0, 2, 1, 3).reshape(G, 9 * Cin, NB * HW)
    ones_row = jnp.ones((G, 1, NB * HW), xcol.dtype)
    xcol_aug = jnp.concatenate([xcol, ones_row], axis=1).astype(jnp.bfloat16)   # (G, 9Cin+1, NB*HW)

    # --- glue: weights, BN fold (scale into rows, shift as an extra column) ----------------
    eps = 1e-5
    scale = gamma / jnp.sqrt(var + eps)                                          # (mid,)
    shift = beta - mean * scale                                                  # (mid,)
    # w3 (mid, Cin, 3, 3) -> (mid, 9*Cin) with (dy,dx,c) flattening matching xcol.
    w3f = jnp.transpose(w3, (0, 2, 3, 1)).reshape(mid, 9 * Cin) * scale[:, None]
    w3_aug = jnp.concatenate([w3f, shift[:, None]], axis=1).astype(jnp.bfloat16)  # (mid, 9Cin+1)

    w1p = jnp.zeros((Kp, mid), jnp.float32).at[:K].set(w1.reshape(K, mid)).astype(jnp.bfloat16)
    b1p = jnp.zeros((Kp, 1), jnp.float32).at[:K, 0].set(b1)

    # Precomputed bilinear upsample operator (H*W, OH*OW) = kron(Wh, Ww)^T.
    kron_np = np.kron(_bilinear_matrix(out_h, H), _bilinear_matrix(out_w, W)).T
    kron = jnp.asarray(kron_np, jnp.float32).astype(jnp.bfloat16)               # (HW, OHW)

    # --- cost estimate (helps XLA schedule the surrounding glue) ---------------------------
    flops = 2.0 * N * (mid * (9 * Cin + 1) * HW + Kp * mid * HW + Kp * HW * OHW)
    bytes_accessed = (2 * (G * (9 * Cin + 1) * NB * HW + mid * (9 * Cin + 1)
                           + Kp * mid + HW * OHW)
                      + 4 * (Kp + N * Kp * OHW))
    cost = pl.CostEstimate(flops=int(flops), transcendentals=0,
                           bytes_accessed=int(bytes_accessed))

    grid_spec = pltpu.PrefetchScalarGridSpec(
        num_scalar_prefetch=0,
        grid=(G,),
        in_specs=[
            pl.BlockSpec((1, 9 * Cin + 1, NB * HW), lambda b: (b, 0, 0)),
            # grid-invariant operands: constant index_map -> block stays resident, no re-DMA
            pl.BlockSpec((mid, 9 * Cin + 1), lambda b: (0, 0)),
            pl.BlockSpec((Kp, mid), lambda b: (0, 0)),
            pl.BlockSpec((Kp, 1), lambda b: (0, 0)),
            pl.BlockSpec((HW, OHW), lambda b: (0, 0)),
        ],
        out_specs=pl.BlockSpec((NB, Kp, OHW), lambda b: (b, 0, 0)),
    )
    out_flat = pl.pallas_call(
        _make_kernel(NB, HW, OHW, Kp),
        out_shape=jax.ShapeDtypeStruct((N, Kp, OHW), jnp.float32),
        grid_spec=grid_spec,
        compiler_params=pltpu.CompilerParams(dimension_semantics=("parallel",)),
        cost_estimate=cost,
    )(xcol_aug, w3_aug, w1p, b1p, kron)

    return out_flat[:, :K].reshape(N, K, out_h, out_w)


# ----------------------------------------------------------------------------- reference
def _reference(x_nchw, params, out_h, out_w):
    w3, gamma, beta, mean, var, w1, b1 = (params[k] for k in
                                          ("w3", "gamma", "beta", "mean", "var", "w1", "b1"))
    eps = 1e-5
    y = lax.conv_general_dilated(x_nchw, w3, (1, 1), [(1, 1), (1, 1)],
                                 dimension_numbers=("NCHW", "OIHW", "NCHW"),
                                 precision=lax.Precision.HIGHEST)
    y = (y - mean[None, :, None, None]) / jnp.sqrt(var[None, :, None, None] + eps)
    y = y * gamma[None, :, None, None] + beta[None, :, None, None]
    y = jnp.maximum(y, 0.0)
    cls = jnp.einsum("nchw,kc->nkhw", y, w1.reshape(w1.shape[0], -1),
                     precision=lax.Precision.HIGHEST) + b1[None, :, None, None]
    Wh = jnp.asarray(_bilinear_matrix(out_h, x_nchw.shape[2]))
    Ww = jnp.asarray(_bilinear_matrix(out_w, x_nchw.shape[3]))
    return jnp.einsum("ih,jw,nkhw->nkij", Wh, Ww, cls, precision=lax.Precision.HIGHEST)


# ----------------------------------------------------------------------------- main
if __name__ == "__main__":
    N, Cin, H, W = 2, 4, 16, 16
    num_classes = 5
    out_h, out_w = 32, 32          # module's (height, width) upsample target
    mid = 256

    key = jax.random.PRNGKey(0)
    ks = jax.random.split(key, 8)
    params = {
        "w3":    (jax.random.normal(ks[0], (mid, Cin, 3, 3), jnp.float32) * 0.05),
        "gamma": (jax.random.uniform(ks[1], (mid,), jnp.float32, 0.5, 1.5)),
        "beta":  (jax.random.normal(ks[2], (mid,), jnp.float32) * 0.1),
        "mean":  (jax.random.normal(ks[3], (mid,), jnp.float32) * 0.1),
        "var":   (jax.random.uniform(ks[4], (mid,), jnp.float32, 0.5, 1.5)),
        "w1":    (jax.random.normal(ks[5], (num_classes, mid, 1, 1), jnp.float32) * 0.05),
        "b1":    (jax.random.normal(ks[6], (num_classes,), jnp.float32) * 0.1),
    }
    x = jax.random.normal(ks[7], (N, Cin, H, W), jnp.float32)

    out = decoder_psp_feature(x, params, out_h, out_w)
    out = jax.block_until_ready(out)

    ref = jax.block_until_ready(_reference(x, params, out_h, out_w))
    np.testing.assert_allclose(np.asarray(out), np.asarray(ref), rtol=1e-2, atol=1e-2)

    print("KERNEL_OK")
</pallas_src>

<mosaic_0001>
module attributes {stable_mosaic.version = 11 : i64} {
  func.func @kernel(%arg0: i32, %arg1: memref<1x37x512xbf16, #tpu.memory_space<vmem>>, %arg2: memref<256x37xbf16, #tpu.memory_space<vmem>>, %arg3: memref<8x256xbf16, #tpu.memory_space<vmem>>, %arg4: memref<8x1xf32, #tpu.memory_space<vmem>>, %arg5: memref<256x1024xbf16, #tpu.memory_space<vmem>>, %arg6: memref<2x8x1024xf32, #tpu.memory_space<vmem>>) attributes {dimension_semantics = [#tpu.dimension_semantics<parallel>], iteration_bounds = array<i64: 1>, scalar_prefetch = 0 : i64, scratch_operands = 0 : i64, tpu.core_type = #tpu.core_type<tc>, window_params = [{transform_indices = @transform_0, window_bounds = array<i64: 1, 37, 512>}, {pipeline_mode = #tpu.pipeline_mode<synchronous>, transform_indices = @transform_1, window_bounds = array<i64: 256, 37>}, {pipeline_mode = #tpu.pipeline_mode<synchronous>, transform_indices = @transform_2, window_bounds = array<i64: 8, 256>}, {pipeline_mode = #tpu.pipeline_mode<synchronous>, transform_indices = @transform_3, window_bounds = array<i64: 8, 1>}, {pipeline_mode = #tpu.pipeline_mode<synchronous>, transform_indices = @transform_4, window_bounds = array<i64: 256, 1024>}, {transform_indices = @transform_5, window_bounds = array<i64: 2, 8, 1024>}]} {
    %c0 = arith.constant 0 : index
    %c0_0 = arith.constant 0 : index
    %c0_1 = arith.constant 0 : index
    %0 = vector.load %arg1[%c0, %c0_0, %c0_1] : memref<1x37x512xbf16, #tpu.memory_space<vmem>>, vector<1x37x512xbf16>
    %1 = vector.shape_cast %0 : vector<1x37x512xbf16> to vector<37x512xbf16>
    %c0_2 = arith.constant 0 : index
    %c0_3 = arith.constant 0 : index
    %2 = vector.load %arg2[%c0_2, %c0_3] : memref<256x37xbf16, #tpu.memory_space<vmem>>, vector<256x37xbf16>
    %cst = arith.constant dense<0.000000e+00> : vector<256x512xf32>
    %3 = tpu.matmul %2, %1, %cst {dimension_numbers = #tpu.dot_dimension_numbers<[1], [0], [0], [1], [0, 0, 1, 1], [], []>} : vector<256x37xbf16>, vector<37x512xbf16>, vector<256x512xf32> -> vector<256x512xf32>
    %cst_4 = arith.constant 0.000000e+00 : f32
    %4 = vector.broadcast %cst_4 : f32 to vector<256x512xf32>
    %5 = arith.maximumf %3, %4 : vector<256x512xf32>
    %6 = arith.truncf %5 : vector<256x512xf32> to vector<256x512xbf16>
    %c0_5 = arith.constant 0 : index
    %c0_6 = arith.constant 0 : index
    %7 = vector.load %arg3[%c0_5, %c0_6] : memref<8x256xbf16, #tpu.memory_space<vmem>>, vector<8x256xbf16>
    %cst_7 = arith.constant dense<0.000000e+00> : vector<8x512xf32>
    %8 = tpu.matmul %7, %6, %cst_7 {dimension_numbers = #tpu.dot_dimension_numbers<[1], [0], [0], [1], [0, 0, 1, 1], [], []>} : vector<8x256xbf16>, vector<256x512xbf16>, vector<8x512xf32> -> vector<8x512xf32>
    %c0_8 = arith.constant 0 : index
    %c0_9 = arith.constant 0 : index
    %9 = vector.load %arg4[%c0_8, %c0_9] : memref<8x1xf32, #tpu.memory_space<vmem>>, vector<8x1xf32>
    %10 = vector.broadcast %9 : vector<8x1xf32> to vector<8x512xf32>
    %11 = arith.addf %8, %10 : vector<8x512xf32>
    %12 = arith.truncf %11 : vector<8x512xf32> to vector<8x512xbf16>
    %13 = vector.extract_strided_slice %12 {offsets = [0, 0], sizes = [8, 256], strides = [1, 1]} : vector<8x512xbf16> to vector<8x256xbf16>
    %14 = vector.extract_strided_slice %12 {offsets = [0, 256], sizes = [8, 256], strides = [1, 1]} : vector<8x512xbf16> to vector<8x256xbf16>
    %15 = tpu.concatenate %13, %14 in 0 : vector<8x256xbf16>, vector<8x256xbf16> -> vector<16x256xbf16>
    %c0_10 = arith.constant 0 : index
    %c0_11 = arith.constant 0 : index
    %16 = vector.load %arg5[%c0_10, %c0_11] : memref<256x1024xbf16, #tpu.memory_space<vmem>>, vector<256x1024xbf16>
    %cst_12 = arith.constant dense<0.000000e+00> : vector<16x1024xf32>
    %17 = tpu.matmul %15, %16, %cst_12 {dimension_numbers = #tpu.dot_dimension_numbers<[1], [0], [0], [1], [0, 0, 1, 1], [], []>} : vector<16x256xbf16>, vector<256x1024xbf16>, vector<16x1024xf32> -> vector<16x1024xf32>
    %18 = vector.shape_cast %17 : vector<16x1024xf32> to vector<2x8x1024xf32>
    %c0_13 = arith.constant 0 : index
    %c0_14 = arith.constant 0 : index
    %c0_15 = arith.constant 0 : index
    %19 = vector.load %arg6[%c0_13, %c0_14, %c0_15] : memref<2x8x1024xf32, #tpu.memory_space<vmem>>, vector<2x8x1024xf32>
    tpu.vector_store %arg6[%c0_13, %c0_14, %c0_15], %18 {strides = array<i32>} : memref<2x8x1024xf32, #tpu.memory_space<vmem>>, vector<2x8x1024xf32>,
    return
  }
  func.func @transform_0(%arg0: i32) -> (i32, i32, i32) {
    %c0_i32 = arith.constant 0 : i32
    %c0_i32_0 = arith.constant 0 : i32
    %c0_i32_1 = arith.constant 0 : i32
    return %arg0, %c0_i32, %c0_i32_0 : i32, i32, i32
  }
  func.func @transform_1(%arg0: i32) -> (i32, i32) {
    %c0_i32 = arith.constant 0 : i32
    %c0_i32_0 = arith.constant 0 : i32
    %c0_i32_1 = arith.constant 0 : i32
    return %c0_i32, %c0_i32_0 : i32, i32
  }
  func.func @transform_2(%arg0: i32) -> (i32, i32) {
    %c0_i32 = arith.constant 0 : i32
    %c0_i32_0 = arith.constant 0 : i32
    %c0_i32_1 = arith.constant 0 : i32
    return %c0_i32, %c0_i32_0 : i32, i32
  }
  func.func @transform_3(%arg0: i32) -> (i32, i32) {
    %c0_i32 = arith.constant 0 : i32
    %c0_i32_0 = arith.constant 0 : i32
    %c0_i32_1 = arith.constant 0 : i32
    return %c0_i32, %c0_i32_0 : i32, i32
  }
  func.func @transform_4(%arg0: i32) -> (i32, i32) {
    %c0_i32 = arith.constant 0 : i32
    %c0_i32_0 = arith.constant 0 : i32
    %c0_i32_1 = arith.constant 0 : i32
    return %c0_i32, %c0_i32_0 : i32, i32
  }
  func.func @transform_5(%arg0: i32) -> (i32, i32, i32) {
    %c0_i32 = arith.constant 0 : i32
    %c0_i32_0 = arith.constant 0 : i32
    %c0_i32_1 = arith.constant 0 : i32
    return %arg0, %c0_i32, %c0_i32_0 : i32, i32, i32
  }
}

</mosaic_0001>

<llo_original>
// kernel: tpu_custom_call.1
$region0: #{tpu_custom_call.1}
  #allocation0 [shape = 'u32[]', space=smem, size = 0x4, offset = 0x4, fixed_abs, tag = 'smem constant byte address 0x4 - core index']
  #allocation1 [shape = 'u32[144,128]{1,0:T(1,128)}', space=vmem, size = 0x12000, scoped, tag = 'internal scratch']
  %s0 = inlined_call_operand.vmem [shape: bf16[1,37,512], index: 0, kind: input, shape index: {}]
  %s1 = inlined_call_operand.vmem [shape: bf16[256,37], index: 1, kind: input, shape index: {}]
  %s2 = inlined_call_operand.vmem [shape: bf16[8,256], index: 2, kind: input, shape index: {}]
  %s3 = inlined_call_operand.vmem [shape: f32[8,1], index: 3, kind: input, shape index: {}]
  %s4 = inlined_call_operand.hbm [shape: bf16[256,1024], index: 4, kind: input, shape index: {}]
  %s5 = inlined_call_operand.hbm [shape: f32[2,8,1024], index: 5, kind: output, shape index: {}]
  %s6 = sld [smem:[#allocation0]]
  $region34: #{tpu_custom_call.1} parent=0
    _
  %s8 = ssub.s32 1, %s6
  %s9 = scalar_select 0, %s8, %s6
  $region1: #{tpu_custom_call.1} parent=0
    #allocation2 [shape = 'u8[524288]{0}', space=vmem, size = 0x80000, scoped, tag = 'input window, operand 4, single buffered']
    #allocation3 [shape = 's32[1]{0}', space=sflag, size = 0x4, scoped, tag = 'scoped memory for tpu_custom_call.1']
    #allocation4 [shape = 's32[1]{0}', space=sflag, size = 0x4, scoped, tag = 'scoped memory for tpu_custom_call.1']
    #allocation5 [shape = 'u8[65536]{0}', space=vmem, size = 0x10000, scoped, tag = 'output window, operand 0, single buffered']
    %10 = vsyncpa [#allocation3], 0
    %11 = vsyncpa [#allocation4], 0
    // Predicated region
    $region2: #{tpu_custom_call.1} parent=1 // pred_check
      _
    $region3: #{tpu_custom_call.1} parent=1 // pred_check_branch
      %13 = sbr.rel (0) target = $region5
    $region4: #{tpu_custom_call.1} parent=1 // pred_region
      _
    $region5: #{tpu_custom_call.1} parent=1 // pred_fallthru
      _
    // Predicated region
    $region6: #{tpu_custom_call.1} parent=1 // pred_check
      _
    $region7: #{tpu_custom_call.1} parent=1 // pred_check_branch
      %15 = sbr.rel (0) target = $region9
    $region8: #{tpu_custom_call.1} parent=1 // pred_region
      _
    $region9: #{tpu_custom_call.1} parent=1 // pred_fallthru
      _
    // Predicated region
    $region10: #{tpu_custom_call.1} parent=1 // pred_check
      _
    $region11: #{tpu_custom_call.1} parent=1 // pred_check_branch
      %17 = sbr.rel (0) target = $region13
    $region12: #{tpu_custom_call.1} parent=1 // pred_region
      _
    $region13: #{tpu_custom_call.1} parent=1 // pred_fallthru
      _
    // Predicated region
    $region14: #{tpu_custom_call.1} parent=1 // pred_check
      _
    $region15: #{tpu_custom_call.1} parent=1 // pred_check_branch
      %19 = sbr.rel (0) target = $region17
    $region16: #{tpu_custom_call.1} parent=1 // pred_region
      _
    $region17: #{tpu_custom_call.1} parent=1 // pred_fallthru
      _
    // Predicated region
    $region18: #{tpu_custom_call.1} parent=1 // pred_check
      _
    $region19: #{tpu_custom_call.1} parent=1 // pred_check_branch
      %21 = sbr.rel (0) target = $region21
    $region20: #{tpu_custom_call.1} parent=1 // pred_region
      %s23 = ssub.s32 16384, 16384
      %24 = vsyncadd [#allocation3], %s23
      %s25 = sshll.u32 [#allocation2], 4
      %s26 = int_to_ptr.vmem [resolvable:$true] %s25
      %31 = dma.hbm_to_vmem [thread:$0]  %s4, 16384, %s26, [#allocation3], 512, 512, 32
    $region21: #{tpu_custom_call.1} parent=1 // pred_fallthru
      _
    // Predicated region
    $region22: #{tpu_custom_call.1} parent=1 // pred_check
      _
    $region23: #{tpu_custom_call.1} parent=1 // pred_check_branch
      %33 = sbr.rel (0) target = $region25
    $region24: #{tpu_custom_call.1} parent=1 // pred_region
      %34 = dma.done [#allocation3], 16384
    $region25: #{tpu_custom_call.1} parent=1 // pred_fallthru
      _
    %v36 = vld [vmem:[%s0] sm:$0xff]
    %v37 = vld [vmem:[%s0 + $0x8] sm:$0xff]
    %v38 = vld [vmem:[%s0 + $0x10] sm:$0xff]
    %v39 = vld [vmem:[%s0 + $0x18] sm:$0xff]
    %v40 = vld [vmem:[%s0 + $0x20] sm:$0xff]
    %v41 = vld [vmem:[%s0 + $0x28] sm:$0xff]
    %v42 = vld [vmem:[%s0 + $0x30] sm:$0xff]
    %v43 = vld [vmem:[%s0 + $0x38] sm:$0xff]
    %v44 = vld [vmem:[%s0 + $0x40] sm:$0x77]
    %v45 = vld [vmem:[%s0 + $0x48] sm:$0x77]
    %v46 = vld [vmem:[%s1] sm:$0xf]
    %v47 = vld [vmem:[%s1 + $0x4] sm:$0xf]
    %v48 = vld [vmem:[%s1 + $0x8] sm:$0xf]
    %v49 = vld [vmem:[%s1 + $0xc] sm:$0xf]
    %v50 = vld [vmem:[%s1 + $0x10] sm:$0xf]
    %v51 = vld [vmem:[%s1 + $0x14] sm:$0xf]
    %v52 = vld [vmem:[%s1 + $0x18] sm:$0xf]
    %v53 = vld [vmem:[%s1 + $0x1c] sm:$0xf]
    %v54 = vld [vmem:[%s1 + $0x20] sm:$0xf]
    %v55 = vld [vmem:[%s1 + $0x24] sm:$0xf]
    %v56 = vld [vmem:[%s1 + $0x28] sm:$0xf]
    %v57 = vld [vmem:[%s1 + $0x2c] sm:$0xf]
    %v58 = vld [vmem:[%s1 + $0x30] sm:$0xf]
    %v59 = vld [vmem:[%s1 + $0x34] sm:$0xf]
    %v60 = vld [vmem:[%s1 + $0x38] sm:$0xf]
    %v61 = vld [vmem:[%s1 + $0x3c] sm:$0xf]
    %v62 = vld [vmem:[%s1 + $0x40] sm:$0xf]
    %v63 = vld [vmem:[%s1 + $0x44] sm:$0xf]
    %v64 = vld [vmem:[%s1 + $0x48] sm:$0xf]
    %v65 = vld [vmem:[%s1 + $0x4c] sm:$0xf]
    %v66 = vld [vmem:[%s1 + $0x50] sm:$0xf]
    %v67 = vld [vmem:[%s1 + $0x54] sm:$0xf]
    %v68 = vld [vmem:[%s1 + $0x58] sm:$0xf]
    %v69 = vld [vmem:[%s1 + $0x5c] sm:$0xf]
    %v70 = vld [vmem:[%s1 + $0x60] sm:$0xf]
    %v71 = vld [vmem:[%s1 + $0x64] sm:$0xf]
    %v72 = vld [vmem:[%s1 + $0x68] sm:$0xf]
    %v73 = vld [vmem:[%s1 + $0x6c] sm:$0xf]
    %v74 = vld [vmem:[%s1 + $0x70] sm:$0xf]
    %v75 = vld [vmem:[%s1 + $0x74] sm:$0xf]
    %v76 = vld [vmem:[%s1 + $0x78] sm:$0xf]
    %v77 = vld [vmem:[%s1 + $0x7c] sm:$0xf]
    %v110 = vunpack.c.l.b16 %v46
    %v111 = vunpack.c.l.b16 %v47
    %v112 = vunpack.c.l.b16 %v48
    %v113 = vunpack.c.l.b16 %v49
    %v114 = vunpack.c.l.b16 %v50
    %v115 = vunpack.c.l.b16 %v51
    %v116 = vunpack.c.l.b16 %v52
    %v117 = vunpack.c.l.b16 %v53
    %v118 = vunpack.c.l.b16 %v54
    %v119 = vunpack.c.l.b16 %v55
    %v120 = vunpack.c.l.b16 %v56
    %v121 = vunpack.c.l.b16 %v57
    %v122 = vunpack.c.l.b16 %v58
    %v123 = vunpack.c.l.b16 %v59
    %v124 = vunpack.c.l.b16 %v60
    %v125 = vunpack.c.l.b16 %v61
    %v126 = vunpack.c.l.b16 %v62
    %v127 = vunpack.c.l.b16 %v63
    %v128 = vunpack.c.l.b16 %v64
    %v129 = vunpack.c.l.b16 %v65
    %v130 = vunpack.c.l.b16 %v66
    %v131 = vunpack.c.l.b16 %v67
    %v132 = vunpack.c.l.b16 %v68
    %v133 = vunpack.c.l.b16 %v69
    %v134 = vunpack.c.l.b16 %v70
    %v135 = vunpack.c.l.b16 %v71
    %v136 = vunpack.c.l.b16 %v72
    %v137 = vunpack.c.l.b16 %v73
    %v138 = vunpack.c.l.b16 %v74
    %v139 = vunpack.c.l.b16 %v75
    %v140 = vunpack.c.l.b16 %v76
    %v141 = vunpack.c.l.b16 %v77
    %v142 = vpack.c.b16 %v111, %v110
    %v143 = vpack.c.b16 %v113, %v112
    %v144 = vpack.c.b16 %v115, %v114
    %v145 = vpack.c.b16 %v117, %v116
    %v146 = vpack.c.b16 %v119, %v118
    %v147 = vpack.c.b16 %v121, %v120
    %v148 = vpack.c.b16 %v123, %v122
    %v149 = vpack.c.b16 %v125, %v124
    %v150 = vpack.c.b16 %v127, %v126
    %v151 = vpack.c.b16 %v129, %v128
    %v152 = vpack.c.b16 %v131, %v130
    %v153 = vpack.c.b16 %v133, %v132
    %v154 = vpack.c.b16 %v135, %v134
    %v155 = vpack.c.b16 %v137, %v136
    %v156 = vpack.c.b16 %v139, %v138
    %v157 = vpack.c.b16 %v141, %v140
    %v168 = vunpack.c.l.b16 %v36
    %v169 = vunpack.c.h.b16 %v36
    %v170 = vunpack.c.l.b16 %v37
    %v171 = vunpack.c.h.b16 %v37
    %v172 = vunpack.c.l.b16 %v38
    %v173 = vunpack.c.h.b16 %v38
    %v174 = vunpack.c.l.b16 %v39
    %v175 = vunpack.c.h.b16 %v39
    %v176 = vunpack.c.l.b16 %v40
    %v177 = vunpack.c.h.b16 %v40
    %v178 = vunpack.c.l.b16 %v41
    %v179 = vunpack.c.h.b16 %v41
    %v180 = vunpack.c.l.b16 %v42
    %v181 = vunpack.c.h.b16 %v42
    %v182 = vunpack.c.l.b16 %v43
    %v183 = vunpack.c.h.b16 %v43
    %v184 = vunpack.c.l.b16 %v44
    %v185 = vunpack.c.h.b16 %v44
    %v186 = vunpack.c.l.b16 %v45
    %v187 = vunpack.c.h.b16 %v45
    %v188 = vpack.c.b16 %v172, %v168
    %v189 = vpack.c.b16 %v173, %v169
    %v190 = vpack.c.b16 %v174, %v170
    %v191 = vpack.c.b16 %v175, %v171
    %v192 = vpack.c.b16 %v180, %v176
    %v193 = vpack.c.b16 %v181, %v177
    %v194 = vpack.c.b16 %v182, %v178
    %v195 = vpack.c.b16 %v183, %v179
    %v196 = vpack.c.b16 %v184, %v184
    %v197 = vpack.c.b16 %v185, %v185
    %v198 = vpack.c.b16 %v186, %v186
    %v199 = vpack.c.b16 %v187, %v187
    %vm208 = vcmask 302080
    %v210 = vsel %vm208, %v142, 0
    %v213 = vsel %vm208, %v143, 0
    %v216 = vsel %vm208, %v144, 0
    %v219 = vsel %vm208, %v145, 0
    %v222 = vsel %vm208, %v146, 0
    %v225 = vsel %vm208, %v147, 0
    %v228 = vsel %vm208, %v148, 0
    %v231 = vsel %vm208, %v149, 0
    %v234 = vsel %vm208, %v150, 0
    %v237 = vsel %vm208, %v151, 0
    %v240 = vsel %vm208, %v152, 0
    %v243 = vsel %vm208, %v153, 0
    %v246 = vsel %vm208, %v154, 0
    %v249 = vsel %vm208, %v155, 0
    %v252 = vsel %vm208, %v156, 0
    %v255 = vsel %vm208, %v157, 0
    %vm257 = vcmask 1041408
    %vm258 = vcmask 1042432
    %v259 = vsel %vm257, 4294967295, 65535
    %v260 = vsel %vm258, %v259, 0
    %v262 = vand.u32 %v196, %v260
    %v265 = vand.u32 %v197, %v260
    %v268 = vand.u32 %v198, %v260
    %v271 = vand.u32 %v199, %v260
    %273 = vmatprep.subr.bf16.mxu0 0
    %274 = vmatpush1.bf16.msra.mxu0 0
    %275 = vmatprep.subr.bf16.mxu0 0
    %276 = vmatpush1.bf16.msra.mxu0 0
    %277 = vmatprep.subr.bf16.mxu0 0
    %278 = vmatpush1.bf16.msra.mxu0 0
    %279 = vmatprep.subr.bf16.mxu0 0
    %280 = vmatpush1.bf16.msra.mxu0 0
    %281 = vmatprep.subr.bf16.mxu0 0
    %282 = vmatpush1.bf16.msra.mxu0 0
    %283 = vmatprep.subr.bf16.mxu0 %v265
    %284 = vmatpush1.bf16.msra.mxu0 %v262
    %285 = vmatprep.subr.bf16.mxu0 %v193
    %286 = vmatpush1.bf16.msra.mxu0 %v192
    %287 = vmatprep.subr.bf16.mxu0 %v189
    %288 = vmatpush1.bf16.msra.mxu0 %v188
    %289 = vmatprep.subr.bf16.mxu0 0
    %290 = vmatpush2.bf16.msra.mxu0 0
    %291 = vmatprep.subr.bf16.mxu0 0
    %292 = vmatpush2.bf16.msra.mxu0 0
    %293 = vmatprep.subr.bf16.mxu0 0
    %294 = vmatpush2.bf16.msra.mxu0 0
    %295 = vmatprep.subr.bf16.mxu0 0
    %296 = vmatpush2.bf16.msra.mxu0 0
    %297 = vmatprep.subr.bf16.mxu0 0
    %298 = vmatpush2.bf16.msra.mxu0 0
    %299 = vmatprep.subr.bf16.mxu0 0
    %300 = vmatpush2.bf16.msra.mxu0 0
    %301 = vmatprep.subr.bf16.mxu0 0
    %302 = vmatpush2.bf16.msra.mxu0 0
    %303 = vmatprep.subr.bf16.mxu0 0
    %304 = vmatpush2.bf16.msra.mxu0 0
    %305 = vmatprep.mubr.bf16.mxu0 0
    %306 = vmatmul.mubr.bf16.gmra.mxu0 %v210
    %v307 = vpop.f32.mrf.mxu0
    %v308 = vadd.f32 0.0, %v307
    %v309 = vpop.f32.mrf.mxu0
    %v310 = vadd.f32 0.0, %v309
    %v311 = vpop.f32.mrf.mxu0
    %v312 = vadd.f32 0.0, %v311
    %v313 = vpop.f32.mrf.mxu0
    %v314 = vadd.f32 0.0, %v313
    %315 = vmatprep.mubr.bf16.mxu0 0
    %316 = vmatmul.mubr.bf16.gmra.mxu0 %v213
    %v317 = vpop.f32.mrf.mxu0
    %v318 = vadd.f32 0.0, %v317
    %v319 = vpop.f32.mrf.mxu0
    %v320 = vadd.f32 0.0, %v319
    %v321 = vpop.f32.mrf.mxu0
    %v322 = vadd.f32 0.0, %v321
    %v323 = vpop.f32.mrf.mxu0
    %v324 = vadd.f32 0.0, %v323
    %325 = vmatprep.mubr.bf16.mxu0 0
    %326 = vmatmul.mubr.bf16.gmra.mxu0 %v216
    %v327 = vpop.f32.mrf.mxu0
    %v328 = vadd.f32 0.0, %v327
    %v329 = vpop.f32.mrf.mxu0
    %v330 = vadd.f32 0.0, %v329
    %v331 = vpop.f32.mrf.mxu0
    %v332 = vadd.f32 0.0, %v331
    %v333 = vpop.f32.mrf.mxu0
    %v334 = vadd.f32 0.0, %v333
    %335 = vmatprep.mubr.bf16.mxu0 0
    %336 = vmatmul.mubr.bf16.gmra.mxu0 %v219
    %v337 = vpop.f32.mrf.mxu0
    %v338 = vadd.f32 0.0, %v337
    %v339 = vpop.f32.mrf.mxu0
    %v340 = vadd.f32 0.0, %v339
    %v341 = vpop.f32.mrf.mxu0
    %v342 = vadd.f32 0.0, %v341
    %v343 = vpop.f32.mrf.mxu0
    %v344 = vadd.f32 0.0, %v343
    %345 = vmatprep.mubr.bf16.mxu0 0
    %346 = vmatmul.mubr.bf16.gmra.mxu0 %v222
    %v347 = vpop.f32.mrf.mxu0
    %v348 = vadd.f32 0.0, %v347
    %v349 = vpop.f32.mrf.mxu0
    %v350 = vadd.f32 0.0, %v349
    %v351 = vpop.f32.mrf.mxu0
    %v352 = vadd.f32 0.0, %v351
    %v353 = vpop.f32.mrf.mxu0
    %v354 = vadd.f32 0.0, %v353
    %355 = vmatprep.mubr.bf16.mxu0 0
    %356 = vmatmul.mubr.bf16.gmra.mxu0 %v225
    %v357 = vpop.f32.mrf.mxu0
    %v358 = vadd.f32 0.0, %v357
    %v359 = vpop.f32.mrf.mxu0
    %v360 = vadd.f32 0.0, %v359
    %v361 = vpop.f32.mrf.mxu0
    %v362 = vadd.f32 0.0, %v361
    %v363 = vpop.f32.mrf.mxu0
    %v364 = vadd.f32 0.0, %v363
    %365 = vmatprep.mubr.bf16.mxu0 0
    %366 = vmatmul.mubr.bf16.gmra.mxu0 %v228
    %v367 = vpop.f32.mrf.mxu0
    %v368 = vadd.f32 0.0, %v367
    %v369 = vpop.f32.mrf.mxu0
    %v370 = vadd.f32 0.0, %v369
    %v371 = vpop.f32.mrf.mxu0
    %v372 = vadd.f32 0.0, %v371
    %v373 = vpop.f32.mrf.mxu0
    %v374 = vadd.f32 0.0, %v373
    %375 = vmatprep.mubr.bf16.mxu0 0
    %376 = vmatmul.mubr.bf16.gmra.mxu0 %v231
    %v377 = vpop.f32.mrf.mxu0
    %v378 = vadd.f32 0.0, %v377
    %v379 = vpop.f32.mrf.mxu0
    %v380 = vadd.f32 0.0, %v379
    %v381 = vpop.f32.mrf.mxu0
    %v382 = vadd.f32 0.0, %v381
    %v383 = vpop.f32.mrf.mxu0
    %v384 = vadd.f32 0.0, %v383
    %385 = vmatprep.mubr.bf16.mxu0 0
    %386 = vmatmul.mubr.bf16.gmra.mxu0 %v234
    %v387 = vpop.f32.mrf.mxu0
    %v388 = vadd.f32 0.0, %v387
    %v389 = vpop.f32.mrf.mxu0
    %v390 = vadd.f32 0.0, %v389
    %v391 = vpop.f32.mrf.mxu0
    %v392 = vadd.f32 0.0, %v391
    %v393 = vpop.f32.mrf.mxu0
    %v394 = vadd.f32 0.0, %v393
    %395 = vmatprep.mubr.bf16.mxu0 0
    %396 = vmatmul.mubr.bf16.gmra.mxu0 %v237
    %v397 = vpop.f32.mrf.mxu0
    %v398 = vadd.f32 0.0, %v397
    %v399 = vpop.f32.mrf.mxu0
    %v400 = vadd.f32 0.0, %v399
    %v401 = vpop.f32.mrf.mxu0
    %v402 = vadd.f32 0.0, %v401
    %v403 = vpop.f32.mrf.mxu0
    %v404 = vadd.f32 0.0, %v403
    %405 = vmatprep.mubr.bf16.mxu0 0
    %406 = vmatmul.mubr.bf16.gmra.mxu0 %v240
    %v407 = vpop.f32.mrf.mxu0
    %v408 = vadd.f32 0.0, %v407
    %v409 = vpop.f32.mrf.mxu0
    %v410 = vadd.f32 0.0, %v409
    %v411 = vpop.f32.mrf.mxu0
    %v412 = vadd.f32 0.0, %v411
    %v413 = vpop.f32.mrf.mxu0
    %v414 = vadd.f32 0.0, %v413
    %415 = vmatprep.mubr.bf16.mxu0 0
    %416 = vmatmul.mubr.bf16.gmra.mxu0 %v243
    %v417 = vpop.f32.mrf.mxu0
    %v418 = vadd.f32 0.0, %v417
    %v419 = vpop.f32.mrf.mxu0
    %v420 = vadd.f32 0.0, %v419
    %v421 = vpop.f32.mrf.mxu0
    %v422 = vadd.f32 0.0, %v421
    %v423 = vpop.f32.mrf.mxu0
    %v424 = vadd.f32 0.0, %v423
    %425 = vmatprep.mubr.bf16.mxu0 0
    %426 = vmatmul.mubr.bf16.gmra.mxu0 %v246
    %v427 = vpop.f32.mrf.mxu0
    %v428 = vadd.f32 0.0, %v427
    %v429 = vpop.f32.mrf.mxu0
    %v430 = vadd.f32 0.0, %v429
    %v431 = vpop.f32.mrf.mxu0
    %v432 = vadd.f32 0.0, %v431
    %v433 = vpop.f32.mrf.mxu0
    %v434 = vadd.f32 0.0, %v433
    %435 = vmatprep.mubr.bf16.mxu0 0
    %436 = vmatmul.mubr.bf16.gmra.mxu0 %v249
    %v437 = vpop.f32.mrf.mxu0
    %v438 = vadd.f32 0.0, %v437
    %v439 = vpop.f32.mrf.mxu0
    %v440 = vadd.f32 0.0, %v439
    %v441 = vpop.f32.mrf.mxu0
    %v442 = vadd.f32 0.0, %v441
    %v443 = vpop.f32.mrf.mxu0
    %v444 = vadd.f32 0.0, %v443
    %445 = vmatprep.mubr.bf16.mxu0 0
    %446 = vmatmul.mubr.bf16.gmra.mxu0 %v252
    %v447 = vpop.f32.mrf.mxu0
    %v448 = vadd.f32 0.0, %v447
    %v449 = vpop.f32.mrf.mxu0
    %v450 = vadd.f32 0.0, %v449
    %v451 = vpop.f32.mrf.mxu0
    %v452 = vadd.f32 0.0, %v451
    %v453 = vpop.f32.mrf.mxu0
    %v454 = vadd.f32 0.0, %v453
    %455 = vmatprep.mubr.bf16.mxu0 0
    %456 = vmatmul.mubr.bf16.gmra.mxu0 %v255
    %v457 = vpop.f32.mrf.mxu0
    %v458 = vadd.f32 0.0, %v457
    %v459 = vpop.f32.mrf.mxu0
    %v460 = vadd.f32 0.0, %v459
    %v461 = vpop.f32.mrf.mxu0
    %v462 = vadd.f32 0.0, %v461
    %v463 = vpop.f32.mrf.mxu0
    %v464 = vadd.f32 0.0, %v463
    %465 = vdwg.mxu0
    %466 = vmatprep.subr.bf16.mxu0 0
    %467 = vmatpush1.bf16.msra.mxu0 0
    %468 = vmatprep.subr.bf16.mxu0 0
    %469 = vmatpush1.bf16.msra.mxu0 0
    %470 = vmatprep.subr.bf16.mxu0 0
    %471 = vmatpush1.bf16.msra.mxu0 0
    %472 = vmatprep.subr.bf16.mxu0 0
    %473 = vmatpush1.bf16.msra.mxu0 0
    %474 = vmatprep.subr.bf16.mxu0 0
    %475 = vmatpush1.bf16.msra.mxu0 0
    %476 = vmatprep.subr.bf16.mxu0 %v271
    %477 = vmatpush1.bf16.msra.mxu0 %v268
    %478 = vmatprep.subr.bf16.mxu0 %v195
    %479 = vmatpush1.bf16.msra.mxu0 %v194
    %480 = vmatprep.subr.bf16.mxu0 %v191
    %481 = vmatpush1.bf16.msra.mxu0 %v190
    %482 = vmatprep.subr.bf16.mxu0 0
    %483 = vmatpush2.bf16.msra.mxu0 0
    %484 = vmatprep.subr.bf16.mxu0 0
    %485 = vmatpush2.bf16.msra.mxu0 0
    %486 = vmatprep.subr.bf16.mxu0 0
    %487 = vmatpush2.bf16.msra.mxu0 0
    %488 = vmatprep.subr.bf16.mxu0 0
    %489 = vmatpush2.bf16.msra.mxu0 0
    %490 = vmatprep.subr.bf16.mxu0 0
    %491 = vmatpush2.bf16.msra.mxu0 0
    %492 = vmatprep.subr.bf16.mxu0 0
    %493 = vmatpush2.bf16.msra.mxu0 0
    %494 = vmatprep.subr.bf16.mxu0 0
    %495 = vmatpush2.bf16.msra.mxu0 0
    %496 = vmatprep.subr.bf16.mxu0 0
    %497 = vmatpush2.bf16.msra.mxu0 0
    %498 = vmatprep.mubr.bf16.mxu0 0
    %499 = vmatmul.mubr.bf16.gmra.mxu0 %v210
    %v500 = vpop.f32.mrf.mxu0
    %v501 = vadd.f32 0.0, %v500
    %v502 = vpop.f32.mrf.mxu0
    %v503 = vadd.f32 0.0, %v502
    %v504 = vpop.f32.mrf.mxu0
    %v505 = vadd.f32 0.0, %v504
    %v506 = vpop.f32.mrf.mxu0
    %v507 = vadd.f32 0.0, %v506
    %508 = vmatprep.mubr.bf16.mxu0 0
    %509 = vmatmul.mubr.bf16.gmra.mxu0 %v213
    %v510 = vpop.f32.mrf.mxu0
    %v511 = vadd.f32 0.0, %v510
    %v512 = vpop.f32.mrf.mxu0
    %v513 = vadd.f32 0.0, %v512
    %v514 = vpop.f32.mrf.mxu0
    %v515 = vadd.f32 0.0, %v514
    %v516 = vpop.f32.mrf.mxu0
    %v517 = vadd.f32 0.0, %v516
    %518 = vmatprep.mubr.bf16.mxu0 0
    %519 = vmatmul.mubr.bf16.gmra.mxu0 %v216
    %v520 = vpop.f32.mrf.mxu0
    %v521 = vadd.f32 0.0, %v520
    %v522 = vpop.f32.mrf.mxu0
    %v523 = vadd.f32 0.0, %v522
    %v524 = vpop.f32.mrf.mxu0
    %v525 = vadd.f32 0.0, %v524
    %v526 = vpop.f32.mrf.mxu0
    %v527 = vadd.f32 0.0, %v526
    %528 = vmatprep.mubr.bf16.mxu0 0
    %529 = vmatmul.mubr.bf16.gmra.mxu0 %v219
    %v530 = vpop.f32.mrf.mxu0
    %v531 = vadd.f32 0.0, %v530
    %v532 = vpop.f32.mrf.mxu0
    %v533 = vadd.f32 0.0, %v532
    %v534 = vpop.f32.mrf.mxu0
    %v535 = vadd.f32 0.0, %v534
    %v536 = vpop.f32.mrf.mxu0
    %v537 = vadd.f32 0.0, %v536
    %538 = vmatprep.mubr.bf16.mxu0 0
    %539 = vmatmul.mubr.bf16.gmra.mxu0 %v222
    %v540 = vpop.f32.mrf.mxu0
    %v541 = vadd.f32 0.0, %v540
    %v542 = vpop.f32.mrf.mxu0
    %v543 = vadd.f32 0.0, %v542
    %v544 = vpop.f32.mrf.mxu0
    %v545 = vadd.f32 0.0, %v544
    %v546 = vpop.f32.mrf.mxu0
    %v547 = vadd.f32 0.0, %v546
    %548 = vmatprep.mubr.bf16.mxu0 0
    %549 = vmatmul.mubr.bf16.gmra.mxu0 %v225
    %v550 = vpop.f32.mrf.mxu0
    %v551 = vadd.f32 0.0, %v550
    %v552 = vpop.f32.mrf.mxu0
    %v553 = vadd.f32 0.0, %v552
    %v554 = vpop.f32.mrf.mxu0
    %v555 = vadd.f32 0.0, %v554
    %v556 = vpop.f32.mrf.mxu0
    %v557 = vadd.f32 0.0, %v556
    %558 = vmatprep.mubr.bf16.mxu0 0
    %559 = vmatmul.mubr.bf16.gmra.mxu0 %v228
    %v560 = vpop.f32.mrf.mxu0
    %v561 = vadd.f32 0.0, %v560
    %v562 = vpop.f32.mrf.mxu0
    %v563 = vadd.f32 0.0, %v562
    %v564 = vpop.f32.mrf.mxu0
    %v565 = vadd.f32 0.0, %v564
    %v566 = vpop.f32.mrf.mxu0
    %v567 = vadd.f32 0.0, %v566
    %568 = vmatprep.mubr.bf16.mxu0 0
    %569 = vmatmul.mubr.bf16.gmra.mxu0 %v231
    %v570 = vpop.f32.mrf.mxu0
    %v571 = vadd.f32 0.0, %v570
    %v572 = vpop.f32.mrf.mxu0
    %v573 = vadd.f32 0.0, %v572
    %v574 = vpop.f32.mrf.mxu0
    %v575 = vadd.f32 0.0, %v574
    %v576 = vpop.f32.mrf.mxu0
    %v577 = vadd.f32 0.0, %v576
    %578 = vmatprep.mubr.bf16.mxu0 0
    %579 = vmatmul.mubr.bf16.gmra.mxu0 %v234
    %v580 = vpop.f32.mrf.mxu0
    %v581 = vadd.f32 0.0, %v580
    %v582 = vpop.f32.mrf.mxu0
    %v583 = vadd.f32 0.0, %v582
    %v584 = vpop.f32.mrf.mxu0
    %v585 = vadd.f32 0.0, %v584
    %v586 = vpop.f32.mrf.mxu0
    %v587 = vadd.f32 0.0, %v586
    %588 = vmatprep.mubr.bf16.mxu0 0
    %589 = vmatmul.mubr.bf16.gmra.mxu0 %v237
    %v590 = vpop.f32.mrf.mxu0
    %v591 = vadd.f32 0.0, %v590
    %v592 = vpop.f32.mrf.mxu0
    %v593 = vadd.f32 0.0, %v592
    %v594 = vpop.f32.mrf.mxu0
    %v595 = vadd.f32 0.0, %v594
    %v596 = vpop.f32.mrf.mxu0
    %v597 = vadd.f32 0.0, %v596
    %598 = vmatprep.mubr.bf16.mxu0 0
    %599 = vmatmul.mubr.bf16.gmra.mxu0 %v240
    %v600 = vpop.f32.mrf.mxu0
    %v601 = vadd.f32 0.0, %v600
    %v602 = vpop.f32.mrf.mxu0
    %v603 = vadd.f32 0.0, %v602
    %v604 = vpop.f32.mrf.mxu0
    %v605 = vadd.f32 0.0, %v604
    %v606 = vpop.f32.mrf.mxu0
    %v607 = vadd.f32 0.0, %v606
    %608 = vmatprep.mubr.bf16.mxu0 0
    %609 = vmatmul.mubr.bf16.gmra.mxu0 %v243
    %v610 = vpop.f32.mrf.mxu0
    %v611 = vadd.f32 0.0, %v610
    %v612 = vpop.f32.mrf.mxu0
    %v613 = vadd.f32 0.0, %v612
    %v614 = vpop.f32.mrf.mxu0
    %v615 = vadd.f32 0.0, %v614
    %v616 = vpop.f32.mrf.mxu0
    %v617 = vadd.f32 0.0, %v616
    %618 = vmatprep.mubr.bf16.mxu0 0
    %619 = vmatmul.mubr.bf16.gmra.mxu0 %v246
    %v620 = vpop.f32.mrf.mxu0
    %v621 = vadd.f32 0.0, %v620
    %v622 = vpop.f32.mrf.mxu0
    %v623 = vadd.f32 0.0, %v622
    %v624 = vpop.f32.mrf.mxu0
    %v625 = vadd.f32 0.0, %v624
    %v626 = vpop.f32.mrf.mxu0
    %v627 = vadd.f32 0.0, %v626
    %628 = vmatprep.mubr.bf16.mxu0 0
    %629 = vmatmul.mubr.bf16.gmra.mxu0 %v249
    %v630 = vpop.f32.mrf.mxu0
    %v631 = vadd.f32 0.0, %v630
    %v632 = vpop.f32.mrf.mxu0
    %v633 = vadd.f32 0.0, %v632
    %v634 = vpop.f32.mrf.mxu0
    %v635 = vadd.f32 0.0, %v634
    %v636 = vpop.f32.mrf.mxu0
    %v637 = vadd.f32 0.0, %v636
    %638 = vmatprep.mubr.bf16.mxu0 0
    %639 = vmatmul.mubr.bf16.gmra.mxu0 %v252
    %v640 = vpop.f32.mrf.mxu0
    %v641 = vadd.f32 0.0, %v640
    %v642 = vpop.f32.mrf.mxu0
    %v643 = vadd.f32 0.0, %v642
    %v644 = vpop.f32.mrf.mxu0
    %v645 = vadd.f32 0.0, %v644
    %v646 = vpop.f32.mrf.mxu0
    %v647 = vadd.f32 0.0, %v646
    %648 = vmatprep.mubr.bf16.mxu0 0
    %649 = vmatmul.mubr.bf16.gmra.mxu0 %v255
    %v650 = vpop.f32.mrf.mxu0
    %v651 = vadd.f32 0.0, %v650
    %v652 = vpop.f32.mrf.mxu0
    %v653 = vadd.f32 0.0, %v652
    %v654 = vpop.f32.mrf.mxu0
    %v655 = vadd.f32 0.0, %v654
    %v656 = vpop.f32.mrf.mxu0
    %v657 = vadd.f32 0.0, %v656
    %658 = vdwg.mxu0
    %v659 = vmax.f32 %v308, 0.0
    %v660 = vmax.f32 %v310, 0.0
    %v661 = vmax.f32 %v501, 0.0
    %v662 = vmax.f32 %v503, 0.0
    %v663 = vmax.f32 %v312, 0.0
    %v664 = vmax.f32 %v314, 0.0
    %v665 = vmax.f32 %v505, 0.0
    %v666 = vmax.f32 %v507, 0.0
    %v667 = vmax.f32 %v318, 0.0
    %v668 = vmax.f32 %v320, 0.0
    %v669 = vmax.f32 %v511, 0.0
    %v670 = vmax.f32 %v513, 0.0
    %v671 = vmax.f32 %v322, 0.0
    %v672 = vmax.f32 %v324, 0.0
    %v673 = vmax.f32 %v515, 0.0
    %v674 = vmax.f32 %v517, 0.0
    %v675 = vmax.f32 %v328, 0.0
    %v676 = vmax.f32 %v330, 0.0
    %v677 = vmax.f32 %v521, 0.0
    %v678 = vmax.f32 %v523, 0.0
    %v679 = vmax.f32 %v332, 0.0
    %v680 = vmax.f32 %v334, 0.0
    %v681 = vmax.f32 %v525, 0.0
    %v682 = vmax.f32 %v527, 0.0
    %v683 = vmax.f32 %v338, 0.0
    %v684 = vmax.f32 %v340, 0.0
    %v685 = vmax.f32 %v531, 0.0
    %v686 = vmax.f32 %v533, 0.0
    %v687 = vmax.f32 %v342, 0.0
    %v688 = vmax.f32 %v344, 0.0
    %v689 = vmax.f32 %v535, 0.0
    %v690 = vmax.f32 %v537, 0.0
    %v691 = vmax.f32 %v348, 0.0
    %v692 = vmax.f32 %v350, 0.0
    %v693 = vmax.f32 %v541, 0.0
    %v694 = vmax.f32 %v543, 0.0
    %v695 = vmax.f32 %v352, 0.0
    %v696 = vmax.f32 %v354, 0.0
    %v697 = vmax.f32 %v545, 0.0
    %v698 = vmax.f32 %v547, 0.0
    %v699 = vmax.f32 %v358, 0.0
    %v700 = vmax.f32 %v360, 0.0
    %v701 = vmax.f32 %v551, 0.0
    %v702 = vmax.f32 %v553, 0.0
    %v703 = vmax.f32 %v362, 0.0
    %v704 = vmax.f32 %v364, 0.0
    %v705 = vmax.f32 %v555, 0.0
    %v706 = vmax.f32 %v557, 0.0
    %v707 = vmax.f32 %v368, 0.0
    %v708 = vmax.f32 %v370, 0.0
    %v709 = vmax.f32 %v561, 0.0
    %v710 = vmax.f32 %v563, 0.0
    %v711 = vmax.f32 %v372, 0.0
    %v712 = vmax.f32 %v374, 0.0
    %v713 = vmax.f32 %v565, 0.0
    %v714 = vmax.f32 %v567, 0.0
    %v715 = vmax.f32 %v378, 0.0
    %v716 = vmax.f32 %v380, 0.0
    %v717 = vmax.f32 %v571, 0.0
    %v718 = vmax.f32 %v573, 0.0
    %v719 = vmax.f32 %v382, 0.0
    %v720 = vmax.f32 %v384, 0.0
    %v721 = vmax.f32 %v575, 0.0
    %v722 = vmax.f32 %v577, 0.0
    %v723 = vmax.f32 %v388, 0.0
    %v724 = vmax.f32 %v390, 0.0
    %v725 = vmax.f32 %v581, 0.0
    %v726 = vmax.f32 %v583, 0.0
    %v727 = vmax.f32 %v392, 0.0
    %v728 = vmax.f32 %v394, 0.0
    %v729 = vmax.f32 %v585, 0.0
    %v730 = vmax.f32 %v587, 0.0
    %v731 = vmax.f32 %v398, 0.0
    %v732 = vmax.f32 %v400, 0.0
    %v733 = vmax.f32 %v591, 0.0
    %v734 = vmax.f32 %v593, 0.0
    %v735 = vmax.f32 %v402, 0.0
    %v736 = vmax.f32 %v404, 0.0
    %v737 = vmax.f32 %v595, 0.0
    %v738 = vmax.f32 %v597, 0.0
    %v739 = vmax.f32 %v408, 0.0
    %v740 = vmax.f32 %v410, 0.0
    %v741 = vmax.f32 %v601, 0.0
    %v742 = vmax.f32 %v603, 0.0
    %v743 = vmax.f32 %v412, 0.0
    %v744 = vmax.f32 %v414, 0.0
    %v745 = vmax.f32 %v605, 0.0
    %v746 = vmax.f32 %v607, 0.0
    %v747 = vmax.f32 %v418, 0.0
    %v748 = vmax.f32 %v420, 0.0
    %v749 = vmax.f32 %v611, 0.0
    %v750 = vmax.f32 %v613, 0.0
    %v751 = vmax.f32 %v422, 0.0
    %v752 = vmax.f32 %v424, 0.0
    %v753 = vmax.f32 %v615, 0.0
    %v754 = vmax.f32 %v617, 0.0
    %v755 = vmax.f32 %v428, 0.0
    %v756 = vmax.f32 %v430, 0.0
    %v757 = vmax.f32 %v621, 0.0
    %v758 = vmax.f32 %v623, 0.0
    %v759 = vmax.f32 %v432, 0.0
    %v760 = vmax.f32 %v434, 0.0
    %v761 = vmax.f32 %v625, 0.0
    %v762 = vmax.f32 %v627, 0.0
    %v763 = vmax.f32 %v438, 0.0
    %v764 = vmax.f32 %v440, 0.0
    %v765 = vmax.f32 %v631, 0.0
    %v766 = vmax.f32 %v633, 0.0
    %v767 = vmax.f32 %v442, 0.0
    %v768 = vmax.f32 %v444, 0.0
    %v769 = vmax.f32 %v635, 0.0
    %v770 = vmax.f32 %v637, 0.0
    %v771 = vmax.f32 %v448, 0.0
    %v772 = vmax.f32 %v450, 0.0
    %v773 = vmax.f32 %v641, 0.0
    %v774 = vmax.f32 %v643, 0.0
    %v775 = vmax.f32 %v452, 0.0
    %v776 = vmax.f32 %v454, 0.0
    %v777 = vmax.f32 %v645, 0.0
    %v778 = vmax.f32 %v647, 0.0
    %v779 = vmax.f32 %v458, 0.0
    %v780 = vmax.f32 %v460, 0.0
    %v781 = vmax.f32 %v651, 0.0
    %v782 = vmax.f32 %v653, 0.0
    %v783 = vmax.f32 %v462, 0.0
    %v784 = vmax.f32 %v464, 0.0
    %v785 = vmax.f32 %v655, 0.0
    %v786 = vmax.f32 %v657, 0.0
    %v787 = vpack.c.bf16 %v663, %v659
    %v788 = vpack.c.bf16 %v664, %v660
    %v789 = vpack.c.bf16 %v665, %v661
    %v790 = vpack.c.bf16 %v666, %v662
    %v791 = vpack.c.bf16 %v671, %v667
    %v792 = vpack.c.bf16 %v672, %v668
    %v793 = vpack.c.bf16 %v673, %v669
    %v794 = vpack.c.bf16 %v674, %v670
    %v795 = vpack.c.bf16 %v679, %v675
    %v796 = vpack.c.bf16 %v680, %v676
    %v797 = vpack.c.bf16 %v681, %v677
    %v798 = vpack.c.bf16 %v682, %v678
    %v799 = vpack.c.bf16 %v687, %v683
    %v800 = vpack.c.bf16 %v688, %v684
    %v801 = vpack.c.bf16 %v689, %v685
    %v802 = vpack.c.bf16 %v690, %v686
    %v803 = vpack.c.bf16 %v695, %v691
    %v804 = vpack.c.bf16 %v696, %v692
    %v805 = vpack.c.bf16 %v697, %v693
    %v806 = vpack.c.bf16 %v698, %v694
    %v807 = vpack.c.bf16 %v703, %v699
    %v808 = vpack.c.bf16 %v704, %v700
    %v809 = vpack.c.bf16 %v705, %v701
    %v810 = vpack.c.bf16 %v706, %v702
    %v811 = vpack.c.bf16 %v711, %v707
    %v812 = vpack.c.bf16 %v712, %v708
    %v813 = vpack.c.bf16 %v713, %v709
    %v814 = vpack.c.bf16 %v714, %v710
    %v815 = vpack.c.bf16 %v719, %v715
    %v816 = vpack.c.bf16 %v720, %v716
    %v817 = vpack.c.bf16 %v721, %v717
    %v818 = vpack.c.bf16 %v722, %v718
    %v819 = vpack.c.bf16 %v727, %v723
    %v820 = vpack.c.bf16 %v728, %v724
    %v821 = vpack.c.bf16 %v729, %v725
    %v822 = vpack.c.bf16 %v730, %v726
    %v823 = vpack.c.bf16 %v735, %v731
    %v824 = vpack.c.bf16 %v736, %v732
    %v825 = vpack.c.bf16 %v737, %v733
    %v826 = vpack.c.bf16 %v738, %v734
    %v827 = vpack.c.bf16 %v743, %v739
    %v828 = vpack.c.bf16 %v744, %v740
    %v829 = vpack.c.bf16 %v745, %v741
    %v830 = vpack.c.bf16 %v746, %v742
    %v831 = vpack.c.bf16 %v751, %v747
    %v832 = vpack.c.bf16 %v752, %v748
    %v833 = vpack.c.bf16 %v753, %v749
    %v834 = vpack.c.bf16 %v754, %v750
    %v835 = vpack.c.bf16 %v759, %v755
    %v836 = vpack.c.bf16 %v760, %v756
    %v837 = vpack.c.bf16 %v761, %v757
    %v838 = vpack.c.bf16 %v762, %v758
    %v839 = vpack.c.bf16 %v767, %v763
    %v840 = vpack.c.bf16 %v768, %v764
    %v841 = vpack.c.bf16 %v769, %v765
    %v842 = vpack.c.bf16 %v770, %v766
    %v843 = vpack.c.bf16 %v775, %v771
    %v844 = vpack.c.bf16 %v776, %v772
    %v845 = vpack.c.bf16 %v777, %v773
    %v846 = vpack.c.bf16 %v778, %v774
    %v847 = vpack.c.bf16 %v783, %v779
    %v848 = vpack.c.bf16 %v784, %v780
    %v849 = vpack.c.bf16 %v785, %v781
    %v850 = vpack.c.bf16 %v786, %v782
    %v851 = vld [vmem:[%s2] sm:$0xff]
    %v852 = vld [vmem:[%s3] sm:$0xff]
    %854 = vset.pattern.permute.xlu0 0
    %855 = vperm.xlu0 %854, %v852
    %v856 = vpop.permute.xlu0 %855
    %v859 = vunpack.c.l.b16 %v851
    %v860 = vunpack.c.h.b16 %v851
    %v861 = vpack.c.b16 %v859, %v859
    %v862 = vpack.c.b16 %v860, %v860
    %865 = vmatprep.subr.bf16.mxu0 %v816
    %866 = vmatpush1.bf16.msra.mxu0 %v815
    %867 = vmatprep.subr.bf16.mxu0 %v812
    %868 = vmatpush1.bf16.msra.mxu0 %v811
    %869 = vmatprep.subr.bf16.mxu0 %v808
    %870 = vmatpush1.bf16.msra.mxu0 %v807
    %871 = vmatprep.subr.bf16.mxu0 %v804
    %872 = vmatpush1.bf16.msra.mxu0 %v803
    %873 = vmatprep.subr.bf16.mxu0 %v800
    %874 = vmatpush1.bf16.msra.mxu0 %v799
    %875 = vmatprep.subr.bf16.mxu0 %v796
    %876 = vmatpush1.bf16.msra.mxu0 %v795
    %877 = vmatprep.subr.bf16.mxu0 %v792
    %878 = vmatpush1.bf16.msra.mxu0 %v791
    %879 = vmatprep.subr.bf16.mxu0 %v788
    %880 = vmatpush1.bf16.msra.mxu0 %v787
    %881 = vmatprep.subr.bf16.mxu0 %v848
    %882 = vmatpush2.bf16.msra.mxu0 %v847
    %883 = vmatprep.subr.bf16.mxu0 %v844
    %884 = vmatpush2.bf16.msra.mxu0 %v843
    %885 = vmatprep.subr.bf16.mxu0 %v840
    %886 = vmatpush2.bf16.msra.mxu0 %v839
    %887 = vmatprep.subr.bf16.mxu0 %v836
    %888 = vmatpush2.bf16.msra.mxu0 %v835
    %889 = vmatprep.subr.bf16.mxu0 %v832
    %890 = vmatpush2.bf16.msra.mxu0 %v831
    %891 = vmatprep.subr.bf16.mxu0 %v828
    %892 = vmatpush2.bf16.msra.mxu0 %v827
    %893 = vmatprep.subr.bf16.mxu0 %v824
    %894 = vmatpush2.bf16.msra.mxu0 %v823
    %895 = vmatprep.subr.bf16.mxu0 %v820
    %896 = vmatpush2.bf16.msra.mxu0 %v819
    %897 = vmatprep.mubr.bf16.mxu0 %v862
    %898 = vmatmul.mubr.bf16.gmra.mxu0 %v861
    %v899 = vpop.f32.mrf.mxu0
    %v900 = vadd.f32 %v856, %v899
    %v901 = vpop.f32.mrf.mxu0
    %v902 = vadd.f32 %v856, %v901
    %v903 = vpop.f32.mrf.mxu0
    %v904 = vpop.f32.mrf.mxu0
    %905 = vdwg.mxu0
    %906 = vmatprep.subr.bf16.mxu0 %v818
    %907 = vmatpush1.bf16.msra.mxu0 %v817
    %908 = vmatprep.subr.bf16.mxu0 %v814
    %909 = vmatpush1.bf16.msra.mxu0 %v813
    %910 = vmatprep.subr.bf16.mxu0 %v810
    %911 = vmatpush1.bf16.msra.mxu0 %v809
    %912 = vmatprep.subr.bf16.mxu0 %v806
    %913 = vmatpush1.bf16.msra.mxu0 %v805
    %914 = vmatprep.subr.bf16.mxu0 %v802
    %915 = vmatpush1.bf16.msra.mxu0 %v801
    %916 = vmatprep.subr.bf16.mxu0 %v798
    %917 = vmatpush1.bf16.msra.mxu0 %v797
    %918 = vmatprep.subr.bf16.mxu0 %v794
    %919 = vmatpush1.bf16.msra.mxu0 %v793
    %920 = vmatprep.subr.bf16.mxu0 %v790
    %921 = vmatpush1.bf16.msra.mxu0 %v789
    %922 = vmatprep.subr.bf16.mxu0 %v850
    %923 = vmatpush2.bf16.msra.mxu0 %v849
    %924 = vmatprep.subr.bf16.mxu0 %v846
    %925 = vmatpush2.bf16.msra.mxu0 %v845
    %926 = vmatprep.subr.bf16.mxu0 %v842
    %927 = vmatpush2.bf16.msra.mxu0 %v841
    %928 = vmatprep.subr.bf16.mxu0 %v838
    %929 = vmatpush2.bf16.msra.mxu0 %v837
    %930 = vmatprep.subr.bf16.mxu0 %v834
    %931 = vmatpush2.bf16.msra.mxu0 %v833
    %932 = vmatprep.subr.bf16.mxu0 %v830
    %933 = vmatpush2.bf16.msra.mxu0 %v829
    %934 = vmatprep.subr.bf16.mxu0 %v826
    %935 = vmatpush2.bf16.msra.mxu0 %v825
    %936 = vmatprep.subr.bf16.mxu0 %v822
    %937 = vmatpush2.bf16.msra.mxu0 %v821
    %938 = vmatprep.mubr.bf16.mxu0 %v862
    %939 = vmatmul.mubr.bf16.gmra.mxu0 %v861
    %v940 = vpop.f32.mrf.mxu0
    %v941 = vadd.f32 %v856, %v940
    %v942 = vpop.f32.mrf.mxu0
    %v943 = vadd.f32 %v856, %v942
    %v944 = vpop.f32.mrf.mxu0
    %v945 = vpop.f32.mrf.mxu0
    %946 = vdwg.mxu0
    %v947 = vpack.c.bf16 %v900, %v900
    %v948 = vpack.c.bf16 %v902, %v902
    %v949 = vpack.c.bf16 %v941, %v941
    %v950 = vpack.c.bf16 %v943, %v943
    %v953 = vrot.slane %v949, 4
    %v954 = vrot.slane %v950, 4
    %vm955 = vcmask 1043456
    %v958 = vsel %vm955, %v947, %v953
    %v962 = vsel %vm955, %v948, %v954
    %v964 = vld [vmem:[#allocation2] sm:$0xff]
    %v965 = vld [vmem:[#allocation2 + $0x8] sm:$0xff]
    %v966 = vld [vmem:[#allocation2 + $0x10] sm:$0xff]
    %v967 = vld [vmem:[#allocation2 + $0x18] sm:$0xff]
    %v968 = vld [vmem:[#allocation2 + $0x20] sm:$0xff]
    %v969 = vld [vmem:[#allocation2 + $0x28] sm:$0xff]
    %v970 = vld [vmem:[#allocation2 + $0x30] sm:$0xff]
    %v971 = vld [vmem:[#allocation2 + $0x38] sm:$0xff]
    %v972 = vld [vmem:[#allocation2 + $0x40] sm:$0xff]
    %v973 = vld [vmem:[#allocation2 + $0x48] sm:$0xff]
    %v974 = vld [vmem:[#allocation2 + $0x50] sm:$0xff]
    %v975 = vld [vmem:[#allocation2 + $0x58] sm:$0xff]
    %v976 = vld [vmem:[#allocation2 + $0x60] sm:$0xff]
    %v977 = vld [vmem:[#allocation2 + $0x68] sm:$0xff]
    %v978 = vld [vmem:[#allocation2 + $0x70] sm:$0xff]
    %v979 = vld [vmem:[#allocation2 + $0x78] sm:$0xff]
    %v980 = vld [vmem:[#allocation2 + $0x80] sm:$0xff]
    %v981 = vld [vmem:[#allocation2 + $0x88] sm:$0xff]
    %v982 = vld [vmem:[#allocation2 + $0x90] sm:$0xff]
    %v983 = vld [vmem:[#allocation2 + $0x98] sm:$0xff]
    %v984 = vld [vmem:[#allocation2 + $0xa0] sm:$0xff]
    %v985 = vld [vmem:[#allocation2 + $0xa8] sm:$0xff]
    %v986 = vld [vmem:[#allocation2 + $0xb0] sm:$0xff]
    %v987 = vld [vmem:[#allocation2 + $0xb8] sm:$0xff]
    %v988 = vld [vmem:[#allocation2 + $0xc0] sm:$0xff]
    %v989 = vld [vmem:[#allocation2 + $0xc8] sm:$0xff]
    %v990 = vld [vmem:[#allocation2 + $0xd0] sm:$0xff]
    %v991 = vld [vmem:[#allocation2 + $0xd8] sm:$0xff]
    %v992 = vld [vmem:[#allocation2 + $0xe0] sm:$0xff]
    %v993 = vld [vmem:[#allocation2 + $0xe8] sm:$0xff]
    %v994 = vld [vmem:[#allocation2 + $0xf0] sm:$0xff]
    %v995 = vld [vmem:[#allocation2 + $0xf8] sm:$0xff]
    %v996 = vld [vmem:[#allocation2 + $0x100] sm:$0xff]
    %v997 = vld [vmem:[#allocation2 + $0x108] sm:$0xff]
    %v998 = vld [vmem:[#allocation2 + $0x110] sm:$0xff]
    %v999 = vld [vmem:[#allocation2 + $0x118] sm:$0xff]
    %v1000 = vld [vmem:[#allocation2 + $0x120] sm:$0xff]
    %v1001 = vld [vmem:[#allocation2 + $0x128] sm:$0xff]
    %v1002 = vld [vmem:[#allocation2 + $0x130] sm:$0xff]
    %v1003 = vld [vmem:[#allocation2 + $0x138] sm:$0xff]
    %v1004 = vld [vmem:[#allocation2 + $0x140] sm:$0xff]
    %v1005 = vld [vmem:[#allocation2 + $0x148] sm:$0xff]
    %v1006 = vld [vmem:[#allocation2 + $0x150] sm:$0xff]
    %v1007 = vld [vmem:[#allocation2 + $0x158] sm:$0xff]
    %v1008 = vld [vmem:[#allocation2 + $0x160] sm:$0xff]
    %v1009 = vld [vmem:[#allocation2 + $0x168] sm:$0xff]
    %v1010 = vld [vmem:[#allocation2 + $0x170] sm:$0xff]
    %v1011 = vld [vmem:[#allocation2 + $0x178] sm:$0xff]
    %v1012 = vld [vmem:[#allocation2 + $0x180] sm:$0xff]
    %v1013 = vld [vmem:[#allocation2 + $0x188] sm:$0xff]
    %v1014 = vld [vmem:[#allocation2 + $0x190] sm:$0xff]
    %v1015 = vld [vmem:[#allocation2 + $0x198] sm:$0xff]
    %v1016 = vld [vmem:[#allocation2 + $0x1a0] sm:$0xff]
    %v1017 = vld [vmem:[#allocation2 + $0x1a8] sm:$0xff]
    %v1018 = vld [vmem:[#allocation2 + $0x1b0] sm:$0xff]
    %v1019 = vld [vmem:[#allocation2 + $0x1b8] sm:$0xff]
    %v1020 = vld [vmem:[#allocation2 + $0x1c0] sm:$0xff]
    %v1021 = vld [vmem:[#allocation2 + $0x1c8] sm:$0xff]
    %v1022 = vld [vmem:[#allocation2 + $0x1d0] sm:$0xff]
    %v1023 = vld [vmem:[#allocation2 + $0x1d8] sm:$0xff]
    %v1024 = vld [vmem:[#allocation2 + $0x1e0] sm:$0xff]
    %v1025 = vld [vmem:[#allocation2 + $0x1e8] sm:$0xff]
    %v1026 = vld [vmem:[#allocation2 + $0x1f0] sm:$0xff]
    %v1027 = vld [vmem:[#allocation2 + $0x1f8] sm:$0xff]
    %v1028 = vld [vmem:[#allocation2 + $0x200] sm:$0xff]
    %v1029 = vld [vmem:[#allocation2 + $0x208] sm:$0xff]
    %v1030 = vld [vmem:[#allocation2 + $0x210] sm:$0xff]
    %v1031 = vld [vmem:[#allocation2 + $0x218] sm:$0xff]
    %v1032 = vld [vmem:[#allocation2 + $0x220] sm:$0xff]
    %v1033 = vld [vmem:[#allocation2 + $0x228] sm:$0xff]
    %v1034 = vld [vmem:[#allocation2 + $0x230] sm:$0xff]
    %v1035 = vld [vmem:[#allocation2 + $0x238] sm:$0xff]
    %v1036 = vld [vmem:[#allocation2 + $0x240] sm:$0xff]
    %v1037 = vld [vmem:[#allocation2 + $0x248] sm:$0xff]
    %v1038 = vld [vmem:[#allocation2 + $0x250] sm:$0xff]
    %v1039 = vld [vmem:[#allocation2 + $0x258] sm:$0xff]
    %v1040 = vld [vmem:[#allocation2 + $0x260] sm:$0xff]
    %v1041 = vld [vmem:[#allocation2 + $0x268] sm:$0xff]
    %v1042 = vld [vmem:[#allocation2 + $0x270] sm:$0xff]
    %v1043 = vld [vmem:[#allocation2 + $0x278] sm:$0xff]
    %v1044 = vld [vmem:[#allocation2 + $0x280] sm:$0xff]
    %v1045 = vld [vmem:[#allocation2 + $0x288] sm:$0xff]
    %v1046 = vld [vmem:[#allocation2 + $0x290] sm:$0xff]
    %v1047 = vld [vmem:[#allocation2 + $0x298] sm:$0xff]
    %v1048 = vld [vmem:[#allocation2 + $0x2a0] sm:$0xff]
    %v1049 = vld [vmem:[#allocation2 + $0x2a8] sm:$0xff]
    %v1050 = vld [vmem:[#allocation2 + $0x2b0] sm:$0xff]
    %v1051 = vld [vmem:[#allocation2 + $0x2b8] sm:$0xff]
    %v1052 = vld [vmem:[#allocation2 + $0x2c0] sm:$0xff]
    %v1053 = vld [vmem:[#allocation2 + $0x2c8] sm:$0xff]
    %v1054 = vld [vmem:[#allocation2 + $0x2d0] sm:$0xff]
    %v1055 = vld [vmem:[#allocation2 + $0x2d8] sm:$0xff]
    %v1056 = vld [vmem:[#allocation2 + $0x2e0] sm:$0xff]
    %v1057 = vld [vmem:[#allocation2 + $0x2e8] sm:$0xff]
    %v1058 = vld [vmem:[#allocation2 + $0x2f0] sm:$0xff]
    %v1059 = vld [vmem:[#allocation2 + $0x2f8] sm:$0xff]
    %v1060 = vld [vmem:[#allocation2 + $0x300] sm:$0xff]
    %v1061 = vld [vmem:[#allocation2 + $0x308] sm:$0xff]
    %v1062 = vld [vmem:[#allocation2 + $0x310] sm:$0xff]
    %v1063 = vld [vmem:[#allocation2 + $0x318] sm:$0xff]
    %v1064 = vld [vmem:[#allocation2 + $0x320] sm:$0xff]
    %v1065 = vld [vmem:[#allocation2 + $0x328] sm:$0xff]
    %v1066 = vld [vmem:[#allocation2 + $0x330] sm:$0xff]
    %v1067 = vld [vmem:[#allocation2 + $0x338] sm:$0xff]
    %v1068 = vld [vmem:[#allocation2 + $0x340] sm:$0xff]
    %v1069 = vld [vmem:[#allocation2 + $0x348] sm:$0xff]
    %v1070 = vld [vmem:[#allocation2 + $0x350] sm:$0xff]
    %v1071 = vld [vmem:[#allocation2 + $0x358] sm:$0xff]
    %v1072 = vld [vmem:[#allocation2 + $0x360] sm:$0xff]
    %v1073 = vld [vmem:[#allocation2 + $0x368] sm:$0xff]
    %v1074 = vld [vmem:[#allocation2 + $0x370] sm:$0xff]
    %v1075 = vld [vmem:[#allocation2 + $0x378] sm:$0xff]
    %v1076 = vld [vmem:[#allocation2 + $0x380] sm:$0xff]
    %v1077 = vld [vmem:[#allocation2 + $0x388] sm:$0xff]
    %v1078 = vld [vmem:[#allocation2 + $0x390] sm:$0xff]
    %v1079 = vld [vmem:[#allocation2 + $0x398] sm:$0xff]
    %v1080 = vld [vmem:[#allocation2 + $0x3a0] sm:$0xff]
    %v1081 = vld [vmem:[#allocation2 + $0x3a8] sm:$0xff]
    %v1082 = vld [vmem:[#allocation2 + $0x3b0] sm:$0xff]
    %v1083 = vld [vmem:[#allocation2 + $0x3b8] sm:$0xff]
    %v1084 = vld [vmem:[#allocation2 + $0x3c0] sm:$0xff]
    %v1085 = vld [vmem:[#allocation2 + $0x3c8] sm:$0xff]
    %v1086 = vld [vmem:[#allocation2 + $0x3d0] sm:$0xff]
    %v1087 = vld [vmem:[#allocation2 + $0x3d8] sm:$0xff]
    %v1088 = vld [vmem:[#allocation2 + $0x3e0] sm:$0xff]
    %v1089 = vld [vmem:[#allocation2 + $0x3e8] sm:$0xff]
    %v1090 = vld [vmem:[#allocation2 + $0x3f0] sm:$0xff]
    %v1091 = vld [vmem:[#allocation2 + $0x3f8] sm:$0xff]
    %v1220 = vunpack.c.l.b16 %v964
    %v1221 = vunpack.c.h.b16 %v964
    %v1222 = vunpack.c.l.b16 %v965
    %v1223 = vunpack.c.h.b16 %v965
    %v1224 = vunpack.c.l.b16 %v966
    %v1225 = vunpack.c.h.b16 %v966
    %v1226 = vunpack.c.l.b16 %v967
    %v1227 = vunpack.c.h.b16 %v967
    %v1228 = vunpack.c.l.b16 %v968
    %v1229 = vunpack.c.h.b16 %v968
    %v1230 = vunpack.c.l.b16 %v969
    %v1231 = vunpack.c.h.b16 %v969
    %v1232 = vunpack.c.l.b16 %v970
    %v1233 = vunpack.c.h.b16 %v970
    %v1234 = vunpack.c.l.b16 %v971
    %v1235 = vunpack.c.h.b16 %v971
    %v1236 = vunpack.c.l.b16 %v972
    %v1237 = vunpack.c.h.b16 %v972
    %v1238 = vunpack.c.l.b16 %v973
    %v1239 = vunpack.c.h.b16 %v973
    %v1240 = vunpack.c.l.b16 %v974
    %v1241 = vunpack.c.h.b16 %v974
    %v1242 = vunpack.c.l.b16 %v975
    %v1243 = vunpack.c.h.b16 %v975
    %v1244 = vunpack.c.l.b16 %v976
    %v1245 = vunpack.c.h.b16 %v976
    %v1246 = vunpack.c.l.b16 %v977
    %v1247 = vunpack.c.h.b16 %v977
    %v1248 = vunpack.c.l.b16 %v978
    %v1249 = vunpack.c.h.b16 %v978
    %v1250 = vunpack.c.l.b16 %v979
    %v1251 = vunpack.c.h.b16 %v979
    %v1252 = vunpack.c.l.b16 %v980
    %v1253 = vunpack.c.h.b16 %v980
    %v1254 = vunpack.c.l.b16 %v981
    %v1255 = vunpack.c.h.b16 %v981
    %v1256 = vunpack.c.l.b16 %v982
    %v1257 = vunpack.c.h.b16 %v982
    %v1258 = vunpack.c.l.b16 %v983
    %v1259 = vunpack.c.h.b16 %v983
    %v1260 = vunpack.c.l.b16 %v984
    %v1261 = vunpack.c.h.b16 %v984
    %v1262 = vunpack.c.l.b16 %v985
    %v1263 = vunpack.c.h.b16 %v985
    %v1264 = vunpack.c.l.b16 %v986
    %v1265 = vunpack.c.h.b16 %v986
    %v1266 = vunpack.c.l.b16 %v987
    %v1267 = vunpack.c.h.b16 %v987
    %v1268 = vunpack.c.l.b16 %v988
    %v1269 = vunpack.c.h.b16 %v988
    %v1270 = vunpack.c.l.b16 %v989
    %v1271 = vunpack.c.h.b16 %v989
    %v1272 = vunpack.c.l.b16 %v990
    %v1273 = vunpack.c.h.b16 %v990
    %v1274 = vunpack.c.l.b16 %v991
    %v1275 = vunpack.c.h.b16 %v991
    %v1276 = vunpack.c.l.b16 %v992
    %v1277 = vunpack.c.h.b16 %v992
    %v1278 = vunpack.c.l.b16 %v993
    %v1279 = vunpack.c.h.b16 %v993
    %v1280 = vunpack.c.l.b16 %v994
    %v1281 = vunpack.c.h.b16 %v994
    %v1282 = vunpack.c.l.b16 %v995
    %v1283 = vunpack.c.h.b16 %v995
    %v1284 = vunpack.c.l.b16 %v996
    %v1285 = vunpack.c.h.b16 %v996
    %v1286 = vunpack.c.l.b16 %v997
    %v1287 = vunpack.c.h.b16 %v997
    %v1288 = vunpack.c.l.b16 %v998
    %v1289 = vunpack.c.h.b16 %v998
    %v1290 = vunpack.c.l.b16 %v999
    %v1291 = vunpack.c.h.b16 %v999
    %v1292 = vunpack.c.l.b16 %v1000
    %v1293 = vunpack.c.h.b16 %v1000
    %v1294 = vunpack.c.l.b16 %v1001
    %v1295 = vunpack.c.h.b16 %v1001
    %v1296 = vunpack.c.l.b16 %v1002
    %v1297 = vunpack.c.h.b16 %v1002
    %v1298 = vunpack.c.l.b16 %v1003
    %v1299 = vunpack.c.h.b16 %v1003
    %v1300 = vunpack.c.l.b16 %v1004
    %v1301 = vunpack.c.h.b16 %v1004
    %v1302 = vunpack.c.l.b16 %v1005
    %v1303 = vunpack.c.h.b16 %v1005
    %v1304 = vunpack.c.l.b16 %v1006
    %v1305 = vunpack.c.h.b16 %v1006
    %v1306 = vunpack.c.l.b16 %v1007
    %v1307 = vunpack.c.h.b16 %v1007
    %v1308 = vunpack.c.l.b16 %v1008
    %v1309 = vunpack.c.h.b16 %v1008
    %v1310 = vunpack.c.l.b16 %v1009
    %v1311 = vunpack.c.h.b16 %v1009
    %v1312 = vunpack.c.l.b16 %v1010
    %v1313 = vunpack.c.h.b16 %v1010
    %v1314 = vunpack.c.l.b16 %v1011
    %v1315 = vunpack.c.h.b16 %v1011
    %v1316 = vunpack.c.l.b16 %v1012
    %v1317 = vunpack.c.h.b16 %v1012
    %v1318 = vunpack.c.l.b16 %v1013
    %v1319 = vunpack.c.h.b16 %v1013
    %v1320 = vunpack.c.l.b16 %v1014
    %v1321 = vunpack.c.h.b16 %v1014
    %v1322 = vunpack.c.l.b16 %v1015
    %v1323 = vunpack.c.h.b16 %v1015
    %v1324 = vunpack.c.l.b16 %v1016
    %v1325 = vunpack.c.h.b16 %v1016
    %v1326 = vunpack.c.l.b16 %v1017
    %v1327 = vunpack.c.h.b16 %v1017
    %v1328 = vunpack.c.l.b16 %v1018
    %v1329 = vunpack.c.h.b16 %v1018
    %v1330 = vunpack.c.l.b16 %v1019
    %v1331 = vunpack.c.h.b16 %v1019
    %v1332 = vunpack.c.l.b16 %v1020
    %v1333 = vunpack.c.h.b16 %v1020
    %v1334 = vunpack.c.l.b16 %v1021
    %v1335 = vunpack.c.h.b16 %v1021
    %v1336 = vunpack.c.l.b16 %v1022
    %v1337 = vunpack.c.h.b16 %v1022
    %v1338 = vunpack.c.l.b16 %v1023
    %v1339 = vunpack.c.h.b16 %v1023
    %v1340 = vunpack.c.l.b16 %v1024
    %v1341 = vunpack.c.h.b16 %v1024
    %v1342 = vunpack.c.l.b16 %v1025
    %v1343 = vunpack.c.h.b16 %v1025
    %v1344 = vunpack.c.l.b16 %v1026
    %v1345 = vunpack.c.h.b16 %v1026
    %v1346 = vunpack.c.l.b16 %v1027
    %v1347 = vunpack.c.h.b16 %v1027
    %v1348 = vunpack.c.l.b16 %v1028
    %v1349 = vunpack.c.h.b16 %v1028
    %v1350 = vunpack.c.l.b16 %v1029
    %v1351 = vunpack.c.h.b16 %v1029
    %v1352 = vunpack.c.l.b16 %v1030
    %v1353 = vunpack.c.h.b16 %v1030
    %v1354 = vunpack.c.l.b16 %v1031
    %v1355 = vunpack.c.h.b16 %v1031
    %v1356 = vunpack.c.l.b16 %v1032
    %v1357 = vunpack.c.h.b16 %v1032
    %v1358 = vunpack.c.l.b16 %v1033
    %v1359 = vunpack.c.h.b16 %v1033
    %v1360 = vunpack.c.l.b16 %v1034
    %v1361 = vunpack.c.h.b16 %v1034
    %v1362 = vunpack.c.l.b16 %v1035
    %v1363 = vunpack.c.h.b16 %v1035
    %v1364 = vunpack.c.l.b16 %v1036
    %v1365 = vunpack.c.h.b16 %v1036
    %v1366 = vunpack.c.l.b16 %v1037
    %v1367 = vunpack.c.h.b16 %v1037
    %v1368 = vunpack.c.l.b16 %v1038
    %v1369 = vunpack.c.h.b16 %v1038
    %v1370 = vunpack.c.l.b16 %v1039
    %v1371 = vunpack.c.h.b16 %v1039
    %v1372 = vunpack.c.l.b16 %v1040
    %v1373 = vunpack.c.h.b16 %v1040
    %v1374 = vunpack.c.l.b16 %v1041
    %v1375 = vunpack.c.h.b16 %v1041
    %v1376 = vunpack.c.l.b16 %v1042
    %v1377 = vunpack.c.h.b16 %v1042
    %v1378 = vunpack.c.l.b16 %v1043
    %v1379 = vunpack.c.h.b16 %v1043
    %v1380 = vunpack.c.l.b16 %v1044
    %v1381 = vunpack.c.h.b16 %v1044
    %v1382 = vunpack.c.l.b16 %v1045
    %v1383 = vunpack.c.h.b16 %v1045
    %v1384 = vunpack.c.l.b16 %v1046
    %v1385 = vunpack.c.h.b16 %v1046
    %v1386 = vunpack.c.l.b16 %v1047
    %v1387 = vunpack.c.h.b16 %v1047
    %v1388 = vunpack.c.l.b16 %v1048
    %v1389 = vunpack.c.h.b16 %v1048
    %v1390 = vunpack.c.l.b16 %v1049
    %v1391 = vunpack.c.h.b16 %v1049
    %v1392 = vunpack.c.l.b16 %v1050
    %v1393 = vunpack.c.h.b16 %v1050
    %v1394 = vunpack.c.l.b16 %v1051
    %v1395 = vunpack.c.h.b16 %v1051
    %v1396 = vunpack.c.l.b16 %v1052
    %v1397 = vunpack.c.h.b16 %v1052
    %v1398 = vunpack.c.l.b16 %v1053
    %v1399 = vunpack.c.h.b16 %v1053
    %v1400 = vunpack.c.l.b16 %v1054
    %v1401 = vunpack.c.h.b16 %v1054
    %v1402 = vunpack.c.l.b16 %v1055
    %v1403 = vunpack.c.h.b16 %v1055
    %v1404 = vunpack.c.l.b16 %v1056
    %v1405 = vunpack.c.h.b16 %v1056
    %v1406 = vunpack.c.l.b16 %v1057
    %v1407 = vunpack.c.h.b16 %v1057
    %v1408 = vunpack.c.l.b16 %v1058
    %v1409 = vunpack.c.h.b16 %v1058
    %v1410 = vunpack.c.l.b16 %v1059
    %v1411 = vunpack.c.h.b16 %v1059
    %v1412 = vunpack.c.l.b16 %v1060
    %v1413 = vunpack.c.h.b16 %v1060
    %v1414 = vunpack.c.l.b16 %v1061
    %v1415 = vunpack.c.h.b16 %v1061
    %v1416 = vunpack.c.l.b16 %v1062
    %v1417 = vunpack.c.h.b16 %v1062
    %v1418 = vunpack.c.l.b16 %v1063
    %v1419 = vunpack.c.h.b16 %v1063
    %v1420 = vunpack.c.l.b16 %v1064
    %v1421 = vunpack.c.h.b16 %v1064
    %v1422 = vunpack.c.l.b16 %v1065
    %v1423 = vunpack.c.h.b16 %v1065
    %v1424 = vunpack.c.l.b16 %v1066
    %v1425 = vunpack.c.h.b16 %v1066
    %v1426 = vunpack.c.l.b16 %v1067
    %v1427 = vunpack.c.h.b16 %v1067
    %v1428 = vunpack.c.l.b16 %v1068
    %v1429 = vunpack.c.h.b16 %v1068
    %v1430 = vunpack.c.l.b16 %v1069
    %v1431 = vunpack.c.h.b16 %v1069
    %v1432 = vunpack.c.l.b16 %v1070
    %v1433 = vunpack.c.h.b16 %v1070
    %v1434 = vunpack.c.l.b16 %v1071
    %v1435 = vunpack.c.h.b16 %v1071
    %v1436 = vunpack.c.l.b16 %v1072
    %v1437 = vunpack.c.h.b16 %v1072
    %v1438 = vunpack.c.l.b16 %v1073
    %v1439 = vunpack.c.h.b16 %v1073
    %v1440 = vunpack.c.l.b16 %v1074
    %v1441 = vunpack.c.h.b16 %v1074
    %v1442 = vunpack.c.l.b16 %v1075
    %v1443 = vunpack.c.h.b16 %v1075
    %v1444 = vunpack.c.l.b16 %v1076
    %v1445 = vunpack.c.h.b16 %v1076
    %v1446 = vunpack.c.l.b16 %v1077
    %v1447 = vunpack.c.h.b16 %v1077
    %v1448 = vunpack.c.l.b16 %v1078
    %v1449 = vunpack.c.h.b16 %v1078
    %v1450 = vunpack.c.l.b16 %v1079
    %v1451 = vunpack.c.h.b16 %v1079
    %v1452 = vunpack.c.l.b16 %v1080
    %v1453 = vunpack.c.h.b16 %v1080
    %v1454 = vunpack.c.l.b16 %v1081
    %v1455 = vunpack.c.h.b16 %v1081
    %v1456 = vunpack.c.l.b16 %v1082
    %v1457 = vunpack.c.h.b16 %v1082
    %v1458 = vunpack.c.l.b16 %v1083
    %v1459 = vunpack.c.h.b16 %v1083
    %v1460 = vunpack.c.l.b16 %v1084
    %v1461 = vunpack.c.h.b16 %v1084
    %v1462 = vunpack.c.l.b16 %v1085
    %v1463 = vunpack.c.h.b16 %v1085
    %v1464 = vunpack.c.l.b16 %v1086
    %v1465 = vunpack.c.h.b16 %v1086
    %v1466 = vunpack.c.l.b16 %v1087
    %v1467 = vunpack.c.h.b16 %v1087
    %v1468 = vunpack.c.l.b16 %v1088
    %v1469 = vunpack.c.h.b16 %v1088
    %v1470 = vunpack.c.l.b16 %v1089
    %v1471 = vunpack.c.h.b16 %v1089
    %v1472 = vunpack.c.l.b16 %v1090
    %v1473 = vunpack.c.h.b16 %v1090
    %v1474 = vunpack.c.l.b16 %v1091
    %v1475 = vunpack.c.h.b16 %v1091
    %v1476 = vpack.c.b16 %v1228, %v1220
    %v1477 = vpack.c.b16 %v1229, %v1221
    %v1478 = vpack.c.b16 %v1230, %v1222
    %v1479 = vpack.c.b16 %v1231, %v1223
    %v1480 = vpack.c.b16 %v1232, %v1224
    %v1481 = vpack.c.b16 %v1233, %v1225
    %v1482 = vpack.c.b16 %v1234, %v1226
    %v1483 = vpack.c.b16 %v1235, %v1227
    %v1484 = vpack.c.b16 %v1244, %v1236
    %v1485 = vpack.c.b16 %v1245, %v1237
    %v1486 = vpack.c.b16 %v1246, %v1238
    %v1487 = vpack.c.b16 %v1247, %v1239
    %v1488 = vpack.c.b16 %v1248, %v1240
    %v1489 = vpack.c.b16 %v1249, %v1241
    %v1490 = vpack.c.b16 %v1250, %v1242
    %v1491 = vpack.c.b16 %v1251, %v1243
    %v1492 = vpack.c.b16 %v1260, %v1252
    %v1493 = vpack.c.b16 %v1261, %v1253
    %v1494 = vpack.c.b16 %v1262, %v1254
    %v1495 = vpack.c.b16 %v1263, %v1255
    %v1496 = vpack.c.b16 %v1264, %v1256
    %v1497 = vpack.c.b16 %v1265, %v1257
    %v1498 = vpack.c.b16 %v1266, %v1258
    %v1499 = vpack.c.b16 %v1267, %v1259
    %v1500 = vpack.c.b16 %v1276, %v1268
    %v1501 = vpack.c.b16 %v1277, %v1269
    %v1502 = vpack.c.b16 %v1278, %v1270
    %v1503 = vpack.c.b16 %v1279, %v1271
    %v1504 = vpack.c.b16 %v1280, %v1272
    %v1505 = vpack.c.b16 %v1281, %v1273
    %v1506 = vpack.c.b16 %v1282, %v1274
    %v1507 = vpack.c.b16 %v1283, %v1275
    %v1508 = vpack.c.b16 %v1292, %v1284
    %v1509 = vpack.c.b16 %v1293, %v1285
    %v1510 = vpack.c.b16 %v1294, %v1286
    %v1511 = vpack.c.b16 %v1295, %v1287
    %v1512 = vpack.c.b16 %v1296, %v1288
    %v1513 = vpack.c.b16 %v1297, %v1289
    %v1514 = vpack.c.b16 %v1298, %v1290
    %v1515 = vpack.c.b16 %v1299, %v1291
    %v1516 = vpack.c.b16 %v1308, %v1300
    %v1517 = vpack.c.b16 %v1309, %v1301
    %v1518 = vpack.c.b16 %v1310, %v1302
    %v1519 = vpack.c.b16 %v1311, %v1303
    %v1520 = vpack.c.b16 %v1312, %v1304
    %v1521 = vpack.c.b16 %v1313, %v1305
    %v1522 = vpack.c.b16 %v1314, %v1306
    %v1523 = vpack.c.b16 %v1315, %v1307
    %v1524 = vpack.c.b16 %v1324, %v1316
    %v1525 = vpack.c.b16 %v1325, %v1317
    %v1526 = vpack.c.b16 %v1326, %v1318
    %v1527 = vpack.c.b16 %v1327, %v1319
    %v1528 = vpack.c.b16 %v1328, %v1320
    %v1529 = vpack.c.b16 %v1329, %v1321
    %v1530 = vpack.c.b16 %v1330, %v1322
    %v1531 = vpack.c.b16 %v1331, %v1323
    %v1532 = vpack.c.b16 %v1340, %v1332
    %v1533 = vpack.c.b16 %v1341, %v1333
    %v1534 = vpack.c.b16 %v1342, %v1334
    %v1535 = vpack.c.b16 %v1343, %v1335
    %v1536 = vpack.c.b16 %v1344, %v1336
    %v1537 = vpack.c.b16 %v1345, %v1337
    %v1538 = vpack.c.b16 %v1346, %v1338
    %v1539 = vpack.c.b16 %v1347, %v1339
    %v1540 = vpack.c.b16 %v1356, %v1348
    %v1541 = vpack.c.b16 %v1357, %v1349
    %v1542 = vpack.c.b16 %v1358, %v1350
    %v1543 = vpack.c.b16 %v1359, %v1351
    %v1544 = vpack.c.b16 %v1360, %v1352
    %v1545 = vpack.c.b16 %v1361, %v1353
    %v1546 = vpack.c.b16 %v1362, %v1354
    %v1547 = vpack.c.b16 %v1363, %v1355
    %v1548 = vpack.c.b16 %v1372, %v1364
    %v1549 = vpack.c.b16 %v1373, %v1365
    %v1550 = vpack.c.b16 %v1374, %v1366
    %v1551 = vpack.c.b16 %v1375, %v1367
    %v1552 = vpack.c.b16 %v1376, %v1368
    %v1553 = vpack.c.b16 %v1377, %v1369
    %v1554 = vpack.c.b16 %v1378, %v1370
    %v1555 = vpack.c.b16 %v1379, %v1371
    %v1556 = vpack.c.b16 %v1388, %v1380
    %v1557 = vpack.c.b16 %v1389, %v1381
    %v1558 = vpack.c.b16 %v1390, %v1382
    %v1559 = vpack.c.b16 %v1391, %v1383
    %v1560 = vpack.c.b16 %v1392, %v1384
    %v1561 = vpack.c.b16 %v1393, %v1385
    %v1562 = vpack.c.b16 %v1394, %v1386
    %v1563 = vpack.c.b16 %v1395, %v1387
    %v1564 = vpack.c.b16 %v1404, %v1396
    %v1565 = vpack.c.b16 %v1405, %v1397
    %v1566 = vpack.c.b16 %v1406, %v1398
    %v1567 = vpack.c.b16 %v1407, %v1399
    %v1568 = vpack.c.b16 %v1408, %v1400
    %v1569 = vpack.c.b16 %v1409, %v1401
    %v1570 = vpack.c.b16 %v1410, %v1402
    %v1571 = vpack.c.b16 %v1411, %v1403
    %v1572 = vpack.c.b16 %v1420, %v1412
    %v1573 = vpack.c.b16 %v1421, %v1413
    %v1574 = vpack.c.b16 %v1422, %v1414
    %v1575 = vpack.c.b16 %v1423, %v1415
    %v1576 = vpack.c.b16 %v1424, %v1416
    %v1577 = vpack.c.b16 %v1425, %v1417
    %v1578 = vpack.c.b16 %v1426, %v1418
    %v1579 = vpack.c.b16 %v1427, %v1419
    %v1580 = vpack.c.b16 %v1436, %v1428
    %v1581 = vpack.c.b16 %v1437, %v1429
    %v1582 = vpack.c.b16 %v1438, %v1430
    %v1583 = vpack.c.b16 %v1439, %v1431
    %v1584 = vpack.c.b16 %v1440, %v1432
    %v1585 = vpack.c.b16 %v1441, %v1433
    %v1586 = vpack.c.b16 %v1442, %v1434
    %v1587 = vpack.c.b16 %v1443, %v1435
    %v1588 = vpack.c.b16 %v1452, %v1444
    %v1589 = vpack.c.b16 %v1453, %v1445
    %v1590 = vpack.c.b16 %v1454, %v1446
    %v1591 = vpack.c.b16 %v1455, %v1447
    %v1592 = vpack.c.b16 %v1456, %v1448
    %v1593 = vpack.c.b16 %v1457, %v1449
    %v1594 = vpack.c.b16 %v1458, %v1450
    %v1595 = vpack.c.b16 %v1459, %v1451
    %v1596 = vpack.c.b16 %v1468, %v1460
    %v1597 = vpack.c.b16 %v1469, %v1461
    %v1598 = vpack.c.b16 %v1470, %v1462
    %v1599 = vpack.c.b16 %v1471, %v1463
    %v1600 = vpack.c.b16 %v1472, %v1464
    %v1601 = vpack.c.b16 %v1473, %v1465
    %v1602 = vpack.c.b16 %v1474, %v1466
    %v1603 = vpack.c.b16 %v1475, %v1467
    %1732 = vmatprep.subr.bf16.mxu0 %v1533
    %1733 = vmatpush1.bf16.msra.mxu0 %v1532
    %1734 = vmatprep.subr.bf16.mxu0 %v1525
    %1735 = vmatpush1.bf16.msra.mxu0 %v1524
    %1736 = vmatprep.subr.bf16.mxu0 %v1517
    %1737 = vmatpush1.bf16.msra.mxu0 %v1516
    %1738 = vmatprep.subr.bf16.mxu0 %v1509
    %1739 = vmatpush1.bf16.msra.mxu0 %v1508
    %1740 = vmatprep.subr.bf16.mxu0 %v1501
    %1741 = vmatpush1.bf16.msra.mxu0 %v1500
    %1742 = vmatprep.subr.bf16.mxu0 %v1493
    %1743 = vmatpush1.bf16.msra.mxu0 %v1492
    %1744 = vmatprep.subr.bf16.mxu0 %v1485
    %1745 = vmatpush1.bf16.msra.mxu0 %v1484
    %1746 = vmatprep.subr.bf16.mxu0 %v1477
    %1747 = vmatpush1.bf16.msra.mxu0 %v1476
    %1748 = vmatprep.subr.bf16.mxu0 %v1597
    %1749 = vmatpush2.bf16.msra.mxu0 %v1596
    %1750 = vmatprep.subr.bf16.mxu0 %v1589
    %1751 = vmatpush2.bf16.msra.mxu0 %v1588
    %1752 = vmatprep.subr.bf16.mxu0 %v1581
    %1753 = vmatpush2.bf16.msra.mxu0 %v1580
    %1754 = vmatprep.subr.bf16.mxu0 %v1573
    %1755 = vmatpush2.bf16.msra.mxu0 %v1572
    %1756 = vmatprep.subr.bf16.mxu0 %v1565
    %1757 = vmatpush2.bf16.msra.mxu0 %v1564
    %1758 = vmatprep.subr.bf16.mxu0 %v1557
    %1759 = vmatpush2.bf16.msra.mxu0 %v1556
    %1760 = vmatprep.subr.bf16.mxu0 %v1549
    %1761 = vmatpush2.bf16.msra.mxu0 %v1548
    %1762 = vmatprep.subr.bf16.mxu0 %v1541
    %1763 = vmatpush2.bf16.msra.mxu0 %v1540
    %1764 = vmatprep.mubr.bf16.mxu0 %v962
    %1765 = vmatmul.mubr.bf16.gmra.mxu0 %v958
    %v1766 = vpop.f32.mrf.mxu0
    %v1767 = vadd.f32 0.0, %v1766
    %v1768 = vpop.f32.mrf.mxu0
    %v1769 = vadd.f32 0.0, %v1768
    %v1770 = vpop.f32.mrf.mxu0
    %v1771 = vadd.f32 0.0, %v1770
    %v1772 = vpop.f32.mrf.mxu0
    %v1773 = vadd.f32 0.0, %v1772
    %1774 = vdwg.mxu0
    %1775 = vmatprep.subr.bf16.mxu0 %v1535
    %1776 = vmatpush1.bf16.msra.mxu0 %v1534
    %1777 = vmatprep.subr.bf16.mxu0 %v1527
    %1778 = vmatpush1.bf16.msra.mxu0 %v1526
    %1779 = vmatprep.subr.bf16.mxu0 %v1519
    %1780 = vmatpush1.bf16.msra.mxu0 %v1518
    %1781 = vmatprep.subr.bf16.mxu0 %v1511
    %1782 = vmatpush1.bf16.msra.mxu0 %v1510
    %1783 = vmatprep.subr.bf16.mxu0 %v1503
    %1784 = vmatpush1.bf16.msra.mxu0 %v1502
    %1785 = vmatprep.subr.bf16.mxu0 %v1495
    %1786 = vmatpush1.bf16.msra.mxu0 %v1494
    %1787 = vmatprep.subr.bf16.mxu0 %v1487
    %1788 = vmatpush1.bf16.msra.mxu0 %v1486
    %1789 = vmatprep.subr.bf16.mxu0 %v1479
    %1790 = vmatpush1.bf16.msra.mxu0 %v1478
    %1791 = vmatprep.subr.bf16.mxu0 %v1599
    %1792 = vmatpush2.bf16.msra.mxu0 %v1598
    %1793 = vmatprep.subr.bf16.mxu0 %v1591
    %1794 = vmatpush2.bf16.msra.mxu0 %v1590
    %1795 = vmatprep.subr.bf16.mxu0 %v1583
    %1796 = vmatpush2.bf16.msra.mxu0 %v1582
    %1797 = vmatprep.subr.bf16.mxu0 %v1575
    %1798 = vmatpush2.bf16.msra.mxu0 %v1574
    %1799 = vmatprep.subr.bf16.mxu0 %v1567
    %1800 = vmatpush2.bf16.msra.mxu0 %v1566
    %1801 = vmatprep.subr.bf16.mxu0 %v1559
    %1802 = vmatpush2.bf16.msra.mxu0 %v1558
    %1803 = vmatprep.subr.bf16.mxu0 %v1551
    %1804 = vmatpush2.bf16.msra.mxu0 %v1550
    %1805 = vmatprep.subr.bf16.mxu0 %v1543
    %1806 = vmatpush2.bf16.msra.mxu0 %v1542
    %1807 = vmatprep.mubr.bf16.mxu0 %v962
    %1808 = vmatmul.mubr.bf16.gmra.mxu0 %v958
    %v1809 = vpop.f32.mrf.mxu0
    %v1810 = vadd.f32 0.0, %v1809
    %v1811 = vpop.f32.mrf.mxu0
    %v1812 = vadd.f32 0.0, %v1811
    %v1813 = vpop.f32.mrf.mxu0
    %v1814 = vadd.f32 0.0, %v1813
    %v1815 = vpop.f32.mrf.mxu0
    %v1816 = vadd.f32 0.0, %v1815
    %1817 = vdwg.mxu0
    %1818 = vmatprep.subr.bf16.mxu0 %v1537
    %1819 = vmatpush1.bf16.msra.mxu0 %v1536
    %1820 = vmatprep.subr.bf16.mxu0 %v1529
    %1821 = vmatpush1.bf16.msra.mxu0 %v1528
    %1822 = vmatprep.subr.bf16.mxu0 %v1521
    %1823 = vmatpush1.bf16.msra.mxu0 %v1520
    %1824 = vmatprep.subr.bf16.mxu0 %v1513
    %1825 = vmatpush1.bf16.msra.mxu0 %v1512
    %1826 = vmatprep.subr.bf16.mxu0 %v1505
    %1827 = vmatpush1.bf16.msra.mxu0 %v1504
    %1828 = vmatprep.subr.bf16.mxu0 %v1497
    %1829 = vmatpush1.bf16.msra.mxu0 %v1496
    %1830 = vmatprep.subr.bf16.mxu0 %v1489
    %1831 = vmatpush1.bf16.msra.mxu0 %v1488
    %1832 = vmatprep.subr.bf16.mxu0 %v1481
    %1833 = vmatpush1.bf16.msra.mxu0 %v1480
    %1834 = vmatprep.subr.bf16.mxu0 %v1601
    %1835 = vmatpush2.bf16.msra.mxu0 %v1600
    %1836 = vmatprep.subr.bf16.mxu0 %v1593
    %1837 = vmatpush2.bf16.msra.mxu0 %v1592
    %1838 = vmatprep.subr.bf16.mxu0 %v1585
    %1839 = vmatpush2.bf16.msra.mxu0 %v1584
    %1840 = vmatprep.subr.bf16.mxu0 %v1577
    %1841 = vmatpush2.bf16.msra.mxu0 %v1576
    %1842 = vmatprep.subr.bf16.mxu0 %v1569
    %1843 = vmatpush2.bf16.msra.mxu0 %v1568
    %1844 = vmatprep.subr.bf16.mxu0 %v1561
    %1845 = vmatpush2.bf16.msra.mxu0 %v1560
    %1846 = vmatprep.subr.bf16.mxu0 %v1553
    %1847 = vmatpush2.bf16.msra.mxu0 %v1552
    %1848 = vmatprep.subr.bf16.mxu0 %v1545
    %1849 = vmatpush2.bf16.msra.mxu0 %v1544
    %1850 = vmatprep.mubr.bf16.mxu0 %v962
    %1851 = vmatmul.mubr.bf16.gmra.mxu0 %v958
    %v1852 = vpop.f32.mrf.mxu0
    %v1853 = vadd.f32 0.0, %v1852
    %v1854 = vpop.f32.mrf.mxu0
    %v1855 = vadd.f32 0.0, %v1854
    %v1856 = vpop.f32.mrf.mxu0
    %v1857 = vadd.f32 0.0, %v1856
    %v1858 = vpop.f32.mrf.mxu0
    %v1859 = vadd.f32 0.0, %v1858
    %1860 = vdwg.mxu0
    %1861 = vmatprep.subr.bf16.mxu0 %v1539
    %1862 = vmatpush1.bf16.msra.mxu0 %v1538
    %1863 = vmatprep.subr.bf16.mxu0 %v1531
    %1864 = vmatpush1.bf16.msra.mxu0 %v1530
    %1865 = vmatprep.subr.bf16.mxu0 %v1523
    %1866 = vmatpush1.bf16.msra.mxu0 %v1522
    %1867 = vmatprep.subr.bf16.mxu0 %v1515
    %1868 = vmatpush1.bf16.msra.mxu0 %v1514
    %1869 = vmatprep.subr.bf16.mxu0 %v1507
    %1870 = vmatpush1.bf16.msra.mxu0 %v1506
    %1871 = vmatprep.subr.bf16.mxu0 %v1499
    %1872 = vmatpush1.bf16.msra.mxu0 %v1498
    %1873 = vmatprep.subr.bf16.mxu0 %v1491
    %1874 = vmatpush1.bf16.msra.mxu0 %v1490
    %1875 = vmatprep.subr.bf16.mxu0 %v1483
    %1876 = vmatpush1.bf16.msra.mxu0 %v1482
    %1877 = vmatprep.subr.bf16.mxu0 %v1603
    %1878 = vmatpush2.bf16.msra.mxu0 %v1602
    %1879 = vmatprep.subr.bf16.mxu0 %v1595
    %1880 = vmatpush2.bf16.msra.mxu0 %v1594
    %1881 = vmatprep.subr.bf16.mxu0 %v1587
    %1882 = vmatpush2.bf16.msra.mxu0 %v1586
    %1883 = vmatprep.subr.bf16.mxu0 %v1579
    %1884 = vmatpush2.bf16.msra.mxu0 %v1578
    %1885 = vmatprep.subr.bf16.mxu0 %v1571
    %1886 = vmatpush2.bf16.msra.mxu0 %v1570
    %1887 = vmatprep.subr.bf16.mxu0 %v1563
    %1888 = vmatpush2.bf16.msra.mxu0 %v1562
    %1889 = vmatprep.subr.bf16.mxu0 %v1555
    %1890 = vmatpush2.bf16.msra.mxu0 %v1554
    %1891 = vmatprep.subr.bf16.mxu0 %v1547
    %1892 = vmatpush2.bf16.msra.mxu0 %v1546
    %1893 = vmatprep.mubr.bf16.mxu0 %v962
    %1894 = vmatmul.mubr.bf16.gmra.mxu0 %v958
    %v1895 = vpop.f32.mrf.mxu0
    %v1896 = vadd.f32 0.0, %v1895
    %v1897 = vpop.f32.mrf.mxu0
    %v1898 = vadd.f32 0.0, %v1897
    %v1899 = vpop.f32.mrf.mxu0
    %v1900 = vadd.f32 0.0, %v1899
    %v1901 = vpop.f32.mrf.mxu0
    %v1902 = vadd.f32 0.0, %v1901
    %1903 = vdwg.mxu0
    %1904 = vst [vmem:[#allocation5] sm:$0xff] %v1767
    %1905 = vst [vmem:[#allocation5 + $0x8] sm:$0xff] %v1769
    %1906 = vst [vmem:[#allocation5 + $0x10] sm:$0xff] %v1810
    %1907 = vst [vmem:[#allocation5 + $0x18] sm:$0xff] %v1812
    %1908 = vst [vmem:[#allocation5 + $0x20] sm:$0xff] %v1853
    %1909 = vst [vmem:[#allocation5 + $0x28] sm:$0xff] %v1855
    %1910 = vst [vmem:[#allocation5 + $0x30] sm:$0xff] %v1896
    %1911 = vst [vmem:[#allocation5 + $0x38] sm:$0xff] %v1898
    %1912 = vst [vmem:[#allocation5 + $0x40] sm:$0xff] %v1771
    %1913 = vst [vmem:[#allocation5 + $0x48] sm:$0xff] %v1773
    %1914 = vst [vmem:[#allocation5 + $0x50] sm:$0xff] %v1814
    %1915 = vst [vmem:[#allocation5 + $0x58] sm:$0xff] %v1816
    %1916 = vst [vmem:[#allocation5 + $0x60] sm:$0xff] %v1857
    %1917 = vst [vmem:[#allocation5 + $0x68] sm:$0xff] %v1859
    %1918 = vst [vmem:[#allocation5 + $0x70] sm:$0xff] %v1900
    %1919 = vst [vmem:[#allocation5 + $0x78] sm:$0xff] %v1902
    // Predicated region
    $region26: #{tpu_custom_call.1} parent=1 // pred_check
      _
    $region27: #{tpu_custom_call.1} parent=1 // pred_check_branch
      %1921 = sbr.rel (0) target = $region29
    $region28: #{tpu_custom_call.1} parent=1 // pred_region
      %s1923 = ssub.s32 2048, 2048
      %1924 = vsyncadd [#allocation4], %s1923
      %s1925 = sshll.u32 [#allocation5], 4
      %s1926 = int_to_ptr.vmem [resolvable:$true] %s1925
      %1931 = dma.vmem_to_hbm [thread:$0]  %s1926, 2048, %s5, [#allocation4], 1024, 1024, 64
    $region29: #{tpu_custom_call.1} parent=1 // pred_fallthru
      _
    // Predicated region
    $region30: #{tpu_custom_call.1} parent=1 // pred_check
      _
    $region31: #{tpu_custom_call.1} parent=1 // pred_check_branch
      %1933 = sbr.rel (0) target = $region33
    $region32: #{tpu_custom_call.1} parent=1 // pred_region
      %1934 = dma.done [#allocation4], 2048
    $region33: #{tpu_custom_call.1} parent=1 // pred_fallthru
      _
    %1935 = vsyncpa [#allocation3], 1
    %1936 = vsyncpa [#allocation4], 1

</llo_original>
